<compile_context>
chip_gen: v7x
topology: tpu7x:2x2x1
jax: 0.10.0
libtpu: 0.0.40
codegen_flags: <defaults>
</compile_context>

<pallas_src>
import functools
import math

import jax
import jax.numpy as jnp
from jax import lax
from jax.experimental import pallas as pl
from jax.experimental.pallas import tpu as pltpu

_LN_EPS = 1e-5
_MASK_VALUE = -1e30  # finite "minus infinity" (safe for exp / online softmax)


# ----------------------------------------------------------------------------
# Small helpers
# ----------------------------------------------------------------------------
def _gelu_tanh(x):
    # tanh-approximate GELU (PyTorch nn.GELU() default is the exact erf form).
    c = math.sqrt(2.0 / math.pi)
    return 0.5 * x * (1.0 + jnp.tanh(c * (x + 0.044715 * x * x * x)))


def _layernorm_f32(x):
    mean = jnp.mean(x, axis=-1, keepdims=True)
    cent = x - mean
    var = jnp.mean(cent * cent, axis=-1, keepdims=True)
    return cent * lax.rsqrt(var + _LN_EPS)


def _vmem_capacity_bytes():
    try:
        return int(pltpu.get_tpu_info().vmem_capacity_bytes)
    except Exception:
        return 64 * 1024 * 1024  # conservative (v7x per-core VMEM)


def _vmem_limit_bytes():
    # Raise the scoped-VMEM limit above the 16/32 MiB defaults, leave headroom.
    return int(_vmem_capacity_bytes() * 7 // 8)


def _mosaic_params(dimension_semantics):
    return pltpu.CompilerParams(
        dimension_semantics=dimension_semantics,
        vmem_limit_bytes=_vmem_limit_bytes(),
    )


def _const_spec(shape, index_map):
    # Single-buffer blocks whose index never changes (resident weights/biases):
    # the default double-buffering would waste a full extra VMEM copy.
    if hasattr(pl, "Buffered"):
        try:
            return pl.BlockSpec(shape, index_map, pipeline_mode=pl.Buffered(1))
        except Exception:
            pass
    return pl.BlockSpec(shape, index_map)


def _pick_tile(size, target, align):
    """Largest divisor of `size` that is a multiple of `align` and <= target.

    Falls back to the full `size` (always a legal block: equal to the array
    dim) when no such divisor exists.
    """
    if size <= target:
        return size
    if size % align != 0:
        return size
    t = (target // align) * align
    while t >= align:
        if size % t == 0:
            return t
        t -= align
    return size


def _ff_row_target():
    # v5e/v6e (128 MiB VMEM) afford a larger row tile than v7x (64 MiB).
    return 1024 if _vmem_capacity_bytes() >= 128 * 1024 * 1024 else 512


# ----------------------------------------------------------------------------
# Fused self-attention block:  out = to_out(MHA(LN_q(x), LN_kv(x))) + x
# grid = (batch, kv_tiles): batch parallel, KV online-softmax reduction.
# ----------------------------------------------------------------------------
def _attention_kernel(x_ref, xkv_ref, gq_ref, bq_ref, gkv_ref, bkv_ref,
                      wq_ref, wkv_ref, wo_ref, bo_ref, o_ref,
                      q_s, m_s, l_s, acc_s,
                      *, num_heads, head_dim, scale, causal):
    kv_idx = pl.program_id(1)
    mid = num_heads * head_dim
    n = x_ref.shape[0]
    tkv = xkv_ref.shape[0]

    @pl.when(kv_idx == 0)
    def _init():
        # Project Q once per batch element; pre-apply the 1/sqrt(d) scale.
        x = x_ref[...].astype(jnp.float32)
        xn = _layernorm_f32(x)
        xq = (xn * gq_ref[...] + bq_ref[...]).astype(jnp.bfloat16)
        q = jnp.dot(xq, wq_ref[...], preferred_element_type=jnp.float32)
        q_s[...] = (q * scale).astype(jnp.bfloat16)
        m_s[...] = jnp.full_like(m_s, _MASK_VALUE)
        l_s[...] = jnp.zeros_like(l_s)
        acc_s[...] = jnp.zeros_like(acc_s)

    # K/V projection for this KV tile (LayerNorm is per-row, so per-tile stats
    # equal the full-sequence stats).
    xkv = xkv_ref[...].astype(jnp.float32)
    kvn = (_layernorm_f32(xkv) * gkv_ref[...] + bkv_ref[...]).astype(jnp.bfloat16)
    kv = jnp.dot(kvn, wkv_ref[...], preferred_element_type=jnp.float32)  # (tkv, 2*mid)
    k = kv[:, :mid].astype(jnp.bfloat16)
    v = kv[:, mid:].astype(jnp.bfloat16)

    if causal:
        row = lax.broadcasted_iota(jnp.int32, (n, tkv), 0)
        col = lax.broadcasted_iota(jnp.int32, (n, tkv), 1) + kv_idx * tkv
        keep = col <= row

    # Static unroll over heads; PV results are written straight into the
    # (n, mid) accumulator slice (no lane-axis concatenation).
    for h in range(num_heads):
        hsl = pl.ds(h * head_dim, head_dim)
        lsl = pl.ds(h, 1)

        q_h = q_s[:, hsl]                                  # (n, hd) bf16
        k_h = k[:, h * head_dim:(h + 1) * head_dim]        # (tkv, hd) bf16
        v_h = v[:, h * head_dim:(h + 1) * head_dim]

        s = lax.dot_general(q_h, k_h, (((1,), (1,)), ((), ())),
                            preferred_element_type=jnp.float32)  # (n, tkv)
        if causal:
            s = jnp.where(keep, s, _MASK_VALUE)

        m_prev = m_s[:, lsl]                               # (n, 1)
        l_prev = l_s[:, lsl]
        m_new = jnp.maximum(m_prev, jnp.max(s, axis=-1, keepdims=True))
        alpha = jnp.exp(m_prev - m_new)
        p = jnp.exp(s - m_new)

        m_s[:, lsl] = m_new
        l_s[:, lsl] = alpha * l_prev + jnp.sum(p, axis=-1, keepdims=True)
        pv = jnp.dot(p.astype(jnp.bfloat16), v_h,
                     preferred_element_type=jnp.float32)   # (n, hd)
        acc_s[:, hsl] = alpha * acc_s[:, hsl] + pv

    @pl.when(kv_idx == pl.num_programs(1) - 1)
    def _finalize():
        # Normalize per head (EUP approx reciprocal), out-project, add residual.
        for h in range(num_heads):
            hsl = pl.ds(h * head_dim, head_dim)
            inv_l = pl.reciprocal(l_s[:, pl.ds(h, 1)], approx=True)
            acc_s[:, hsl] = acc_s[:, hsl] * inv_l
        o = acc_s[...].astype(jnp.bfloat16)                # (n, mid)
        out = jnp.dot(o, wo_ref[...], preferred_element_type=jnp.float32)
        out = out + bo_ref[...] + x_ref[...].astype(jnp.float32)
        o_ref[...] = out.astype(o_ref.dtype)


def attention_block(x, p, *, num_heads, head_dim, causal=False,
                    kv_block_size=None):
    b, n, d = x.shape
    mid = num_heads * head_dim

    tkv = kv_block_size if kv_block_size is not None else _pick_tile(n, 512, 8)
    if n % tkv != 0 or (tkv != n and tkv % 8 != 0):
        raise ValueError(f"bad kv tile {tkv} for seq len {n}")
    num_kv = n // tkv

    kernel = functools.partial(
        _attention_kernel, num_heads=num_heads, head_dim=head_dim,
        scale=head_dim ** -0.5, causal=causal)

    # Matmul operands in bf16 (f32 accumulation inside the kernel).
    wq = p["wq"].astype(jnp.bfloat16)
    wkv = p["wkv"].astype(jnp.bfloat16)
    wo = p["wo"].astype(jnp.bfloat16)

    def const2d(shape):
        return _const_spec(shape, lambda i, k: (0, 0))

    return pl.pallas_call(
        kernel,
        out_shape=jax.ShapeDtypeStruct((b, n, d), x.dtype),
        grid_spec=pltpu.PrefetchScalarGridSpec(
            num_scalar_prefetch=0,
            grid=(b, num_kv),
            in_specs=[
                # full sequence (Q projection + residual), resident per batch
                pl.BlockSpec((pl.Squeezed(), n, d), lambda i, k: (i, 0, 0)),
                # KV tile of the same array, streamed along the reduction axis
                pl.BlockSpec((pl.Squeezed(), tkv, d), lambda i, k: (i, k, 0)),
                const2d((1, d)), const2d((1, d)),          # LN_q gamma / beta
                const2d((1, d)), const2d((1, d)),          # LN_kv gamma / beta
                const2d((d, mid)),                         # Wq (bf16)
                const2d((d, 2 * mid)),                     # Wkv (bf16)
                const2d((mid, d)),                         # Wo (bf16)
                const2d((1, d)),                           # bo
            ],
            out_specs=pl.BlockSpec((pl.Squeezed(), n, d), lambda i, k: (i, 0, 0)),
            scratch_shapes=[
                pltpu.VMEM((n, mid), jnp.bfloat16),        # Q (pre-scaled)
                pltpu.VMEM((n, num_heads), jnp.float32),   # running max
                pltpu.VMEM((n, num_heads), jnp.float32),   # running denom
                pltpu.VMEM((n, mid), jnp.float32),         # output accumulator
            ],
        ),
        compiler_params=_mosaic_params(("parallel", "arbitrary")),
    )(x, x, p["ln_q_g"], p["ln_q_b"], p["ln_kv_g"], p["ln_kv_b"],
      wq, wkv, wo, p["bo"])


# ----------------------------------------------------------------------------
# Fused feed-forward block:  out = gelu(x @ W1 + b1) @ W2 + b2 + x
# grid = (row_tiles, hidden_tiles): rows parallel, hidden reduction.
# ----------------------------------------------------------------------------
def _feed_forward_kernel(x_ref, w1_ref, b1_ref, w2_ref, b2_ref, o_ref, acc_ref):
    j = pl.program_id(1)

    @pl.when(j == 0)
    def _init():
        acc_ref[...] = jnp.zeros_like(acc_ref)

    x_bf16 = x_ref[...].astype(jnp.bfloat16)
    h = jnp.dot(x_bf16, w1_ref[...], preferred_element_type=jnp.float32)
    h = _gelu_tanh(h + b1_ref[...])                        # f32 elementwise
    acc_ref[...] += jnp.dot(h.astype(jnp.bfloat16), w2_ref[...],
                            preferred_element_type=jnp.float32)

    @pl.when(j == pl.num_programs(1) - 1)
    def _finalize():
        out = acc_ref[...] + b2_ref[...] + x_ref[...].astype(jnp.float32)
        o_ref[...] = out.astype(o_ref.dtype)


def feed_forward_block(x, p, *, row_block_size=None, hidden_block_size=None):
    b, n, d = x.shape
    hidden = p["w1"].shape[1]
    rows = b * n
    x2 = x.reshape(rows, d)

    tr = row_block_size if row_block_size is not None else _pick_tile(
        rows, _ff_row_target(), 8)
    th = hidden_block_size if hidden_block_size is not None else _pick_tile(
        hidden, 1024, 128)
    if rows % tr != 0 or (tr != rows and tr % 8 != 0):
        raise ValueError(f"bad row tile {tr} for {rows} rows")
    if hidden % th != 0 or (th != hidden and th % 128 != 0):
        raise ValueError(f"bad hidden tile {th} for hidden {hidden}")

    w1 = p["w1"].astype(jnp.bfloat16)
    w2 = p["w2"].astype(jnp.bfloat16)

    out = pl.pallas_call(
        _feed_forward_kernel,
        out_shape=jax.ShapeDtypeStruct((rows, d), x.dtype),
        grid_spec=pltpu.PrefetchScalarGridSpec(
            num_scalar_prefetch=0,
            grid=(rows // tr, hidden // th),
            in_specs=[
                pl.BlockSpec((tr, d), lambda i, j: (i, 0)),    # activations
                pl.BlockSpec((d, th), lambda i, j: (0, j)),    # W1 col block
                pl.BlockSpec((1, th), lambda i, j: (0, j)),    # b1 block
                pl.BlockSpec((th, d), lambda i, j: (j, 0)),    # W2 row block
                _const_spec((1, d), lambda i, j: (0, 0)),      # b2 (resident)
            ],
            out_specs=pl.BlockSpec((tr, d), lambda i, j: (i, 0)),
            scratch_shapes=[pltpu.VMEM((tr, d), jnp.float32)],
        ),
        compiler_params=_mosaic_params(("parallel", "arbitrary")),
    )(x2, w1, p["b1"], w2, p["b2"])
    return out.reshape(b, n, d)


# ----------------------------------------------------------------------------
# TransformerBlock.forward
# ----------------------------------------------------------------------------
def transformer_block(x, params, *, num_heads, head_dim, causal=False,
                      kv_block_size=None, row_block_size=None,
                      hidden_block_size=None):
    x = attention_block(x, params["attn"], num_heads=num_heads,
                        head_dim=head_dim, causal=causal,
                        kv_block_size=kv_block_size)       # attn + residual
    x = feed_forward_block(x, params["ff"],
                           row_block_size=row_block_size,
                           hidden_block_size=hidden_block_size)  # ff + residual
    return x


# ----------------------------------------------------------------------------
# Pure-JAX reference for verification.
# matmul_dtype=jnp.float32  -> faithful f32 reference of the PyTorch forward.
# matmul_dtype=jnp.bfloat16 -> emulates the kernel's bf16-operand / f32-accum
#                              matmul policy (per the perf review).
# ----------------------------------------------------------------------------
def _ref_layernorm(x, g, b):
    m = jnp.mean(x, axis=-1, keepdims=True)
    v = jnp.mean((x - m) ** 2, axis=-1, keepdims=True)
    return (x - m) * lax.rsqrt(v + _LN_EPS) * g + b


def _ref_transformer_block(x, params, *, num_heads, head_dim, causal=False,
                           matmul_dtype=jnp.float32):
    hp = jax.lax.Precision.HIGHEST

    def mm(a, w):
        return jnp.dot(a.astype(matmul_dtype), w.astype(matmul_dtype),
                       preferred_element_type=jnp.float32, precision=hp)

    p = params["attn"]
    xq = _ref_layernorm(x, p["ln_q_g"], p["ln_q_b"])
    xkv = _ref_layernorm(x, p["ln_kv_g"], p["ln_kv_b"])
    q = mm(xq, p["wq"])
    kv = mm(xkv, p["wkv"])
    mid = num_heads * head_dim
    k, v = kv[..., :mid], kv[..., mid:]

    bsz, n, _ = x.shape
    heads = lambda t: t.reshape(bsz, n, num_heads, head_dim).transpose(0, 2, 1, 3)
    qh, kh, vh = heads(q), heads(k), heads(v)
    s = jnp.einsum("bhnd,bhmd->bhnm", qh.astype(matmul_dtype),
                   kh.astype(matmul_dtype),
                   preferred_element_type=jnp.float32,
                   precision=hp) * (head_dim ** -0.5)
    if causal:
        mask = jnp.tril(jnp.ones((n, n), dtype=bool))
        s = jnp.where(mask[None, None], s, _MASK_VALUE)
    attn = jax.nn.softmax(s, axis=-1)
    o = jnp.einsum("bhnm,bhmd->bhnd", attn.astype(matmul_dtype),
                   vh.astype(matmul_dtype),
                   preferred_element_type=jnp.float32, precision=hp)
    o = o.transpose(0, 2, 1, 3).reshape(bsz, n, mid)
    x = mm(o, p["wo"]) + p["bo"] + x

    f = params["ff"]
    h = _gelu_tanh(mm(x, f["w1"]) + f["b1"])
    return mm(h, f["w2"]) + f["b2"] + x


def init_params(key, features, num_heads, head_features, multiplier):
    mid = num_heads * head_features
    hidden = features * multiplier
    ks = jax.random.split(key, 12)
    lin = lambda k, fan_in, shape: (
        jax.random.normal(k, shape, jnp.float32) / math.sqrt(fan_in))
    attn = {
        "ln_q_g": 1.0 + 0.1 * jax.random.normal(ks[0], (1, features), jnp.float32),
        "ln_q_b": 0.1 * jax.random.normal(ks[1], (1, features), jnp.float32),
        "ln_kv_g": 1.0 + 0.1 * jax.random.normal(ks[2], (1, features), jnp.float32),
        "ln_kv_b": 0.1 * jax.random.normal(ks[3], (1, features), jnp.float32),
        "wq": lin(ks[4], features, (features, mid)),
        "wkv": lin(ks[5], features, (features, 2 * mid)),
        "wo": lin(ks[6], mid, (mid, features)),
        "bo": 0.1 * jax.random.normal(ks[7], (1, features), jnp.float32),
    }
    ff = {
        "w1": lin(ks[8], features, (features, hidden)),
        "b1": 0.1 * jax.random.normal(ks[9], (1, hidden), jnp.float32),
        "w2": lin(ks[10], hidden, (hidden, features)),
        "b2": 0.1 * jax.random.normal(ks[11], (1, features), jnp.float32),
    }
    return {"attn": attn, "ff": ff}


if __name__ == "__main__":
    key = jax.random.PRNGKey(0)
    k_p, k_x = jax.random.split(key)

    # Small, TPU-friendly shapes (lane dims are multiples of 128).
    batch, seq = 2, 32
    features, num_heads, head_features, multiplier = 128, 2, 128, 2

    params = init_params(k_p, features, num_heads, head_features, multiplier)
    x = jax.random.normal(k_x, (batch, seq, features), jnp.float32)

    run = functools.partial(
        transformer_block, num_heads=num_heads, head_dim=head_features,
        kv_block_size=16,        # 2 KV tiles   -> exercises the online-softmax sweep
        row_block_size=32,       # 2 row tiles  -> exercises the FF row grid
        hidden_block_size=128,   # 2 hidden tiles -> exercises the FF reduction axis
    )

    for causal in (False, True):
        out = jax.block_until_ready(run(x, params, causal=causal))
        assert out.shape == x.shape and out.dtype == x.dtype

        # Tight check against a reference that uses the same bf16-operand /
        # f32-accumulate matmul policy as the kernel.
        ref_bf16 = _ref_transformer_block(
            x, params, num_heads=num_heads, head_dim=head_features,
            causal=causal, matmul_dtype=jnp.bfloat16)
        err = float(jnp.max(jnp.abs(out - ref_bf16)))
        assert jnp.allclose(out, ref_bf16, atol=3e-2, rtol=3e-2), err

        # Loose sanity bound against the exact-f32 reference (deviation is the
        # documented bf16-matmul-operand approximation).
        ref_f32 = _ref_transformer_block(
            x, params, num_heads=num_heads, head_dim=head_features,
            causal=causal, matmul_dtype=jnp.float32)
        err32 = float(jnp.max(jnp.abs(out - ref_f32)))
        assert err32 < 0.2, err32

    print("KERNEL_OK")
</pallas_src>

<mosaic_0001>
module attributes {stable_mosaic.version = 11 : i64} {
  func.func @_attention_kernel(%arg0: i32, %arg1: i32, %arg2: memref<1x32x128xf32, #tpu.memory_space<vmem>>, %arg3: memref<1x16x128xf32, #tpu.memory_space<vmem>>, %arg4: memref<1x128xf32, #tpu.memory_space<vmem>>, %arg5: memref<1x128xf32, #tpu.memory_space<vmem>>, %arg6: memref<1x128xf32, #tpu.memory_space<vmem>>, %arg7: memref<1x128xf32, #tpu.memory_space<vmem>>, %arg8: memref<128x256xbf16, #tpu.memory_space<vmem>>, %arg9: memref<128x512xbf16, #tpu.memory_space<vmem>>, %arg10: memref<256x128xbf16, #tpu.memory_space<vmem>>, %arg11: memref<1x128xf32, #tpu.memory_space<vmem>>, %arg12: memref<1x32x128xf32, #tpu.memory_space<vmem>>, %arg13: memref<32x256xbf16, #tpu.memory_space<vmem>>, %arg14: memref<32x2xf32, #tpu.memory_space<vmem>>, %arg15: memref<32x2xf32, #tpu.memory_space<vmem>>, %arg16: memref<32x256xf32, #tpu.memory_space<vmem>>) attributes {dimension_semantics = [#tpu.dimension_semantics<parallel>, #tpu.dimension_semantics<arbitrary>], iteration_bounds = array<i64: 2, 2>, scalar_prefetch = 0 : i64, scratch_operands = 4 : i64, tpu.core_type = #tpu.core_type<tc>, window_params = [{transform_indices = @transform_0, window_bounds = array<i64: 1, 32, 128>}, {transform_indices = @transform_1, window_bounds = array<i64: 1, 16, 128>}, {pipeline_mode = #tpu.pipeline_mode<synchronous>, transform_indices = @transform_2, window_bounds = array<i64: 1, 128>}, {pipeline_mode = #tpu.pipeline_mode<synchronous>, transform_indices = @transform_3, window_bounds = array<i64: 1, 128>}, {pipeline_mode = #tpu.pipeline_mode<synchronous>, transform_indices = @transform_4, window_bounds = array<i64: 1, 128>}, {pipeline_mode = #tpu.pipeline_mode<synchronous>, transform_indices = @transform_5, window_bounds = array<i64: 1, 128>}, {pipeline_mode = #tpu.pipeline_mode<synchronous>, transform_indices = @transform_6, window_bounds = array<i64: 128, 256>}, {pipeline_mode = #tpu.pipeline_mode<synchronous>, transform_indices = @transform_7, window_bounds = array<i64: 128, 512>}, {pipeline_mode = #tpu.pipeline_mode<synchronous>, transform_indices = @transform_8, window_bounds = array<i64: 256, 128>}, {pipeline_mode = #tpu.pipeline_mode<synchronous>, transform_indices = @transform_9, window_bounds = array<i64: 1, 128>}, {transform_indices = @transform_10, window_bounds = array<i64: 1, 32, 128>}]} {
    %c0_i32 = arith.constant 0 : i32
    %0 = arith.cmpi eq, %arg1, %c0_i32 : i32
    %1 = arith.extui %0 : i1 to i32
    %c0_i32_0 = arith.constant 0 : i32
    %2 = arith.cmpi ne, %1, %c0_i32_0 : i32
    scf.if %2 {
      %c0_49 = arith.constant 0 : index
      %c0_50 = arith.constant 0 : index
      %c0_51 = arith.constant 0 : index
      %91 = vector.load %arg2[%c0_49, %c0_50, %c0_51] : memref<1x32x128xf32, #tpu.memory_space<vmem>>, vector<1x32x128xf32>
      %92 = vector.shape_cast %91 : vector<1x32x128xf32> to vector<32x128xf32>
      %cst_52 = arith.constant dense<0.000000e+00> : vector<32xf32>
      %93 = vector.multi_reduction <add>, %92, %cst_52 [1] : vector<32x128xf32> to vector<32xf32>
      %94 = vector.shape_cast %93 : vector<32xf32> to vector<32x1xf32>
      %cst_53 = arith.constant 1.280000e+02 : f32
      %95 = vector.broadcast %cst_53 : f32 to vector<32x1xf32>
      %96 = arith.divf %94, %95 : vector<32x1xf32>
      %97 = vector.broadcast %96 : vector<32x1xf32> to vector<32x128xf32>
      %98 = arith.subf %92, %97 : vector<32x128xf32>
      %99 = arith.mulf %98, %98 : vector<32x128xf32>
      %cst_54 = arith.constant dense<0.000000e+00> : vector<32xf32>
      %100 = vector.multi_reduction <add>, %99, %cst_54 [1] : vector<32x128xf32> to vector<32xf32>
      %101 = vector.shape_cast %100 : vector<32xf32> to vector<32x1xf32>
      %cst_55 = arith.constant 1.280000e+02 : f32
      %102 = vector.broadcast %cst_55 : f32 to vector<32x1xf32>
      %103 = arith.divf %101, %102 : vector<32x1xf32>
      %cst_56 = arith.constant 9.99999974E-6 : f32
      %104 = vector.broadcast %cst_56 : f32 to vector<32x1xf32>
      %105 = arith.addf %103, %104 : vector<32x1xf32>
      %106 = math.rsqrt %105 : vector<32x1xf32>
      %107 = vector.broadcast %106 : vector<32x1xf32> to vector<32x128xf32>
      %108 = arith.mulf %98, %107 : vector<32x128xf32>
      %c0_57 = arith.constant 0 : index
      %c0_58 = arith.constant 0 : index
      %109 = vector.load %arg4[%c0_57, %c0_58] : memref<1x128xf32, #tpu.memory_space<vmem>>, vector<1x128xf32>
      %110 = vector.broadcast %109 : vector<1x128xf32> to vector<32x128xf32>
      %111 = arith.mulf %108, %110 : vector<32x128xf32>
      %c0_59 = arith.constant 0 : index
      %c0_60 = arith.constant 0 : index
      %112 = vector.load %arg5[%c0_59, %c0_60] : memref<1x128xf32, #tpu.memory_space<vmem>>, vector<1x128xf32>
      %113 = vector.broadcast %112 : vector<1x128xf32> to vector<32x128xf32>
      %114 = arith.addf %111, %113 : vector<32x128xf32>
      %115 = arith.truncf %114 : vector<32x128xf32> to vector<32x128xbf16>
      %c0_61 = arith.constant 0 : index
      %c0_62 = arith.constant 0 : index
      %116 = vector.load %arg8[%c0_61, %c0_62] : memref<128x256xbf16, #tpu.memory_space<vmem>>, vector<128x256xbf16>
      %cst_63 = arith.constant dense<0.000000e+00> : vector<32x256xf32>
      %117 = tpu.matmul %115, %116, %cst_63 {dimension_numbers = #tpu.dot_dimension_numbers<[1], [0], [0], [1], [0, 0, 1, 1], [], []>} : vector<32x128xbf16>, vector<128x256xbf16>, vector<32x256xf32> -> vector<32x256xf32>
      %cst_64 = arith.constant 0.0883883461 : f32
      %118 = vector.broadcast %cst_64 : f32 to vector<32x256xf32>
      %119 = arith.mulf %117, %118 : vector<32x256xf32>
      %120 = arith.truncf %119 : vector<32x256xf32> to vector<32x256xbf16>
      %c0_65 = arith.constant 0 : index
      %c0_66 = arith.constant 0 : index
      %121 = vector.load %arg13[%c0_65, %c0_66] : memref<32x256xbf16, #tpu.memory_space<vmem>>, vector<32x256xbf16>
      tpu.vector_store %arg13[%c0_65, %c0_66], %120 {strides = array<i32>} : memref<32x256xbf16, #tpu.memory_space<vmem>>, vector<32x256xbf16>,
      %cst_67 = arith.constant -1.000000e+30 : f32
      %122 = vector.broadcast %cst_67 : f32 to vector<32x2xf32>
      %c0_68 = arith.constant 0 : index
      %c0_69 = arith.constant 0 : index
      %123 = vector.load %arg14[%c0_68, %c0_69] : memref<32x2xf32, #tpu.memory_space<vmem>>, vector<32x2xf32>
      tpu.vector_store %arg14[%c0_68, %c0_69], %122 {strides = array<i32>} : memref<32x2xf32, #tpu.memory_space<vmem>>, vector<32x2xf32>,
      %cst_70 = arith.constant 0.000000e+00 : f32
      %124 = vector.broadcast %cst_70 : f32 to vector<32x2xf32>
      %c0_71 = arith.constant 0 : index
      %c0_72 = arith.constant 0 : index
      %125 = vector.load %arg15[%c0_71, %c0_72] : memref<32x2xf32, #tpu.memory_space<vmem>>, vector<32x2xf32>
      tpu.vector_store %arg15[%c0_71, %c0_72], %124 {strides = array<i32>} : memref<32x2xf32, #tpu.memory_space<vmem>>, vector<32x2xf32>,
      %cst_73 = arith.constant 0.000000e+00 : f32
      %126 = vector.broadcast %cst_73 : f32 to vector<32x256xf32>
      %c0_74 = arith.constant 0 : index
      %c0_75 = arith.constant 0 : index
      %127 = vector.load %arg16[%c0_74, %c0_75] : memref<32x256xf32, #tpu.memory_space<vmem>>, vector<32x256xf32>
      tpu.vector_store %arg16[%c0_74, %c0_75], %126 {strides = array<i32>} : memref<32x256xf32, #tpu.memory_space<vmem>>, vector<32x256xf32>,
    } else {
    }
    %c0 = arith.constant 0 : index
    %c0_1 = arith.constant 0 : index
    %c0_2 = arith.constant 0 : index
    %3 = vector.load %arg3[%c0, %c0_1, %c0_2] : memref<1x16x128xf32, #tpu.memory_space<vmem>>, vector<1x16x128xf32>
    %4 = vector.shape_cast %3 : vector<1x16x128xf32> to vector<16x128xf32>
    %cst = arith.constant dense<0.000000e+00> : vector<16xf32>
    %5 = vector.multi_reduction <add>, %4, %cst [1] : vector<16x128xf32> to vector<16xf32>
    %6 = vector.shape_cast %5 : vector<16xf32> to vector<16x1xf32>
    %cst_3 = arith.constant 1.280000e+02 : f32
    %7 = vector.broadcast %cst_3 : f32 to vector<16x1xf32>
    %8 = arith.divf %6, %7 : vector<16x1xf32>
    %9 = vector.broadcast %8 : vector<16x1xf32> to vector<16x128xf32>
    %10 = arith.subf %4, %9 : vector<16x128xf32>
    %11 = arith.mulf %10, %10 : vector<16x128xf32>
    %cst_4 = arith.constant dense<0.000000e+00> : vector<16xf32>
    %12 = vector.multi_reduction <add>, %11, %cst_4 [1] : vector<16x128xf32> to vector<16xf32>
    %13 = vector.shape_cast %12 : vector<16xf32> to vector<16x1xf32>
    %cst_5 = arith.constant 1.280000e+02 : f32
    %14 = vector.broadcast %cst_5 : f32 to vector<16x1xf32>
    %15 = arith.divf %13, %14 : vector<16x1xf32>
    %cst_6 = arith.constant 9.99999974E-6 : f32
    %16 = vector.broadcast %cst_6 : f32 to vector<16x1xf32>
    %17 = arith.addf %15, %16 : vector<16x1xf32>
    %18 = math.rsqrt %17 : vector<16x1xf32>
    %19 = vector.broadcast %18 : vector<16x1xf32> to vector<16x128xf32>
    %20 = arith.mulf %10, %19 : vector<16x128xf32>
    %c0_7 = arith.constant 0 : index
    %c0_8 = arith.constant 0 : index
    %21 = vector.load %arg6[%c0_7, %c0_8] : memref<1x128xf32, #tpu.memory_space<vmem>>, vector<1x128xf32>
    %22 = vector.broadcast %21 : vector<1x128xf32> to vector<16x128xf32>
    %23 = arith.mulf %20, %22 : vector<16x128xf32>
    %c0_9 = arith.constant 0 : index
    %c0_10 = arith.constant 0 : index
    %24 = vector.load %arg7[%c0_9, %c0_10] : memref<1x128xf32, #tpu.memory_space<vmem>>, vector<1x128xf32>
    %25 = vector.broadcast %24 : vector<1x128xf32> to vector<16x128xf32>
    %26 = arith.addf %23, %25 : vector<16x128xf32>
    %27 = arith.truncf %26 : vector<16x128xf32> to vector<16x128xbf16>
    %c0_11 = arith.constant 0 : index
    %c0_12 = arith.constant 0 : index
    %28 = vector.load %arg9[%c0_11, %c0_12] : memref<128x512xbf16, #tpu.memory_space<vmem>>, vector<128x512xbf16>
    %cst_13 = arith.constant dense<0.000000e+00> : vector<16x512xf32>
    %29 = tpu.matmul %27, %28, %cst_13 {dimension_numbers = #tpu.dot_dimension_numbers<[1], [0], [0], [1], [0, 0, 1, 1], [], []>} : vector<16x128xbf16>, vector<128x512xbf16>, vector<16x512xf32> -> vector<16x512xf32>
    %30 = vector.extract_strided_slice %29 {offsets = [0, 0], sizes = [16, 256], strides = [1, 1]} : vector<16x512xf32> to vector<16x256xf32>
    %31 = arith.truncf %30 : vector<16x256xf32> to vector<16x256xbf16>
    %32 = vector.extract_strided_slice %29 {offsets = [0, 256], sizes = [16, 256], strides = [1, 1]} : vector<16x512xf32> to vector<16x256xf32>
    %33 = arith.truncf %32 : vector<16x256xf32> to vector<16x256xbf16>
    %c0_14 = arith.constant 0 : index
    %c0_15 = arith.constant 0 : index
    %34 = vector.load %arg13[%c0_14, %c0_15] : memref<32x256xbf16, #tpu.memory_space<vmem>>, vector<32x128xbf16>
    %35 = vector.extract_strided_slice %31 {offsets = [0, 0], sizes = [16, 128], strides = [1, 1]} : vector<16x256xbf16> to vector<16x128xbf16>
    %36 = vector.extract_strided_slice %33 {offsets = [0, 0], sizes = [16, 128], strides = [1, 1]} : vector<16x256xbf16> to vector<16x128xbf16>
    %cst_16 = arith.constant dense<0.000000e+00> : vector<32x16xf32>
    %37 = tpu.matmul %34, %35, %cst_16 {dimension_numbers = #tpu.dot_dimension_numbers<[1], [1], [0], [0], [0, 0, 1, 0], [], []>} : vector<32x128xbf16>, vector<16x128xbf16>, vector<32x16xf32> -> vector<32x16xf32>
    %c0_17 = arith.constant 0 : index
    %c0_18 = arith.constant 0 : index
    %38 = vector.load %arg14[%c0_17, %c0_18] : memref<32x2xf32, #tpu.memory_space<vmem>>, vector<32x1xf32>
    %c0_19 = arith.constant 0 : index
    %c0_20 = arith.constant 0 : index
    %39 = vector.load %arg15[%c0_19, %c0_20] : memref<32x2xf32, #tpu.memory_space<vmem>>, vector<32x1xf32>
    %cst_21 = arith.constant dense<0xFF800000> : vector<32xf32>
    %40 = vector.multi_reduction <maximumf>, %37, %cst_21 [1] : vector<32x16xf32> to vector<32xf32>
    %41 = vector.shape_cast %40 : vector<32xf32> to vector<32x1xf32>
    %42 = arith.maximumf %38, %41 : vector<32x1xf32>
    %43 = arith.subf %38, %42 : vector<32x1xf32>
    %44 = math.exp %43 : vector<32x1xf32>
    %45 = vector.broadcast %42 : vector<32x1xf32> to vector<32x16xf32>
    %46 = arith.subf %37, %45 : vector<32x16xf32>
    %47 = math.exp %46 : vector<32x16xf32>
    %c0_22 = arith.constant 0 : index
    %c0_23 = arith.constant 0 : index
    %48 = vector.load %arg14[%c0_22, %c0_23] : memref<32x2xf32, #tpu.memory_space<vmem>>, vector<32x1xf32>
    tpu.vector_store %arg14[%c0_22, %c0_23], %42 {strides = array<i32>} : memref<32x2xf32, #tpu.memory_space<vmem>>, vector<32x1xf32>,
    %49 = arith.mulf %44, %39 : vector<32x1xf32>
    %cst_24 = arith.constant dense<0.000000e+00> : vector<32xf32>
    %50 = vector.multi_reduction <add>, %47, %cst_24 [1] : vector<32x16xf32> to vector<32xf32>
    %51 = vector.shape_cast %50 : vector<32xf32> to vector<32x1xf32>
    %52 = arith.addf %49, %51 : vector<32x1xf32>
    %c0_25 = arith.constant 0 : index
    %c0_26 = arith.constant 0 : index
    %53 = vector.load %arg15[%c0_25, %c0_26] : memref<32x2xf32, #tpu.memory_space<vmem>>, vector<32x1xf32>
    tpu.vector_store %arg15[%c0_25, %c0_26], %52 {strides = array<i32>} : memref<32x2xf32, #tpu.memory_space<vmem>>, vector<32x1xf32>,
    %54 = arith.truncf %47 : vector<32x16xf32> to vector<32x16xbf16>
    %cst_27 = arith.constant dense<0.000000e+00> : vector<32x128xf32>
    %55 = tpu.matmul %54, %36, %cst_27 {dimension_numbers = #tpu.dot_dimension_numbers<[1], [0], [0], [1], [0, 0, 1, 1], [], []>} : vector<32x16xbf16>, vector<16x128xbf16>, vector<32x128xf32> -> vector<32x128xf32>
    %c0_28 = arith.constant 0 : index
    %c0_29 = arith.constant 0 : index
    %56 = vector.load %arg16[%c0_28, %c0_29] : memref<32x256xf32, #tpu.memory_space<vmem>>, vector<32x128xf32>
    %57 = vector.broadcast %44 : vector<32x1xf32> to vector<32x128xf32>
    %58 = arith.mulf %57, %56 : vector<32x128xf32>
    %59 = arith.addf %58, %55 : vector<32x128xf32>
    %c0_30 = arith.constant 0 : index
    %c0_31 = arith.constant 0 : index
    %60 = vector.load %arg16[%c0_30, %c0_31] : memref<32x256xf32, #tpu.memory_space<vmem>>, vector<32x128xf32>
    tpu.vector_store %arg16[%c0_30, %c0_31], %59 {strides = array<i32>} : memref<32x256xf32, #tpu.memory_space<vmem>>, vector<32x128xf32>,
    %c0_32 = arith.constant 0 : index
    %c128 = arith.constant 128 : index
    %61 = vector.load %arg13[%c0_32, %c128] : memref<32x256xbf16, #tpu.memory_space<vmem>>, vector<32x128xbf16>
    %62 = vector.extract_strided_slice %31 {offsets = [0, 128], sizes = [16, 128], strides = [1, 1]} : vector<16x256xbf16> to vector<16x128xbf16>
    %63 = vector.extract_strided_slice %33 {offsets = [0, 128], sizes = [16, 128], strides = [1, 1]} : vector<16x256xbf16> to vector<16x128xbf16>
    %cst_33 = arith.constant dense<0.000000e+00> : vector<32x16xf32>
    %64 = tpu.matmul %61, %62, %cst_33 {dimension_numbers = #tpu.dot_dimension_numbers<[1], [1], [0], [0], [0, 0, 1, 0], [], []>} : vector<32x128xbf16>, vector<16x128xbf16>, vector<32x16xf32> -> vector<32x16xf32>
    %c0_34 = arith.constant 0 : index
    %c1 = arith.constant 1 : index
    %65 = vector.load %arg14[%c0_34, %c1] : memref<32x2xf32, #tpu.memory_space<vmem>>, vector<32x1xf32>
    %c0_35 = arith.constant 0 : index
    %c1_36 = arith.constant 1 : index
    %66 = vector.load %arg15[%c0_35, %c1_36] : memref<32x2xf32, #tpu.memory_space<vmem>>, vector<32x1xf32>
    %cst_37 = arith.constant dense<0xFF800000> : vector<32xf32>
    %67 = vector.multi_reduction <maximumf>, %64, %cst_37 [1] : vector<32x16xf32> to vector<32xf32>
    %68 = vector.shape_cast %67 : vector<32xf32> to vector<32x1xf32>
    %69 = arith.maximumf %65, %68 : vector<32x1xf32>
    %70 = arith.subf %65, %69 : vector<32x1xf32>
    %71 = math.exp %70 : vector<32x1xf32>
    %72 = vector.broadcast %69 : vector<32x1xf32> to vector<32x16xf32>
    %73 = arith.subf %64, %72 : vector<32x16xf32>
    %74 = math.exp %73 : vector<32x16xf32>
    %c0_38 = arith.constant 0 : index
    %c1_39 = arith.constant 1 : index
    %75 = vector.load %arg14[%c0_38, %c1_39] : memref<32x2xf32, #tpu.memory_space<vmem>>, vector<32x1xf32>
    tpu.vector_store %arg14[%c0_38, %c1_39], %69 {strides = array<i32>} : memref<32x2xf32, #tpu.memory_space<vmem>>, vector<32x1xf32>,
    %76 = arith.mulf %71, %66 : vector<32x1xf32>
    %cst_40 = arith.constant dense<0.000000e+00> : vector<32xf32>
    %77 = vector.multi_reduction <add>, %74, %cst_40 [1] : vector<32x16xf32> to vector<32xf32>
    %78 = vector.shape_cast %77 : vector<32xf32> to vector<32x1xf32>
    %79 = arith.addf %76, %78 : vector<32x1xf32>
    %c0_41 = arith.constant 0 : index
    %c1_42 = arith.constant 1 : index
    %80 = vector.load %arg15[%c0_41, %c1_42] : memref<32x2xf32, #tpu.memory_space<vmem>>, vector<32x1xf32>
    tpu.vector_store %arg15[%c0_41, %c1_42], %79 {strides = array<i32>} : memref<32x2xf32, #tpu.memory_space<vmem>>, vector<32x1xf32>,
    %81 = arith.truncf %74 : vector<32x16xf32> to vector<32x16xbf16>
    %cst_43 = arith.constant dense<0.000000e+00> : vector<32x128xf32>
    %82 = tpu.matmul %81, %63, %cst_43 {dimension_numbers = #tpu.dot_dimension_numbers<[1], [0], [0], [1], [0, 0, 1, 1], [], []>} : vector<32x16xbf16>, vector<16x128xbf16>, vector<32x128xf32> -> vector<32x128xf32>
    %c0_44 = arith.constant 0 : index
    %c128_45 = arith.constant 128 : index
    %83 = vector.load %arg16[%c0_44, %c128_45] : memref<32x256xf32, #tpu.memory_space<vmem>>, vector<32x128xf32>
    %84 = vector.broadcast %71 : vector<32x1xf32> to vector<32x128xf32>
    %85 = arith.mulf %84, %83 : vector<32x128xf32>
    %86 = arith.addf %85, %82 : vector<32x128xf32>
    %c0_46 = arith.constant 0 : index
    %c128_47 = arith.constant 128 : index
    %87 = vector.load %arg16[%c0_46, %c128_47] : memref<32x256xf32, #tpu.memory_space<vmem>>, vector<32x128xf32>
    tpu.vector_store %arg16[%c0_46, %c128_47], %86 {strides = array<i32>} : memref<32x256xf32, #tpu.memory_space<vmem>>, vector<32x128xf32>,
    %c1_i32 = arith.constant 1 : i32
    %88 = arith.cmpi eq, %arg1, %c1_i32 : i32
    %89 = arith.extui %88 : i1 to i32
    %c0_i32_48 = arith.constant 0 : i32
    %90 = arith.cmpi ne, %89, %c0_i32_48 : i32
    scf.if %90 {
      %c0_49 = arith.constant 0 : index
      %c0_50 = arith.constant 0 : index
      %91 = vector.load %arg15[%c0_49, %c0_50] : memref<32x2xf32, #tpu.memory_space<vmem>>, vector<32x1xf32>
      %92 = tpu.reciprocal %91 {approx = true} : vector<32x1xf32> -> vector<32x1xf32>
      %c0_51 = arith.constant 0 : index
      %c0_52 = arith.constant 0 : index
      %93 = vector.load %arg16[%c0_51, %c0_52] : memref<32x256xf32, #tpu.memory_space<vmem>>, vector<32x128xf32>
      %94 = vector.broadcast %92 : vector<32x1xf32> to vector<32x128xf32>
      %95 = arith.mulf %93, %94 : vector<32x128xf32>
      %c0_53 = arith.constant 0 : index
      %c0_54 = arith.constant 0 : index
      %96 = vector.load %arg16[%c0_53, %c0_54] : memref<32x256xf32, #tpu.memory_space<vmem>>, vector<32x128xf32>
      tpu.vector_store %arg16[%c0_53, %c0_54], %95 {strides = array<i32>} : memref<32x256xf32, #tpu.memory_space<vmem>>, vector<32x128xf32>,
      %c0_55 = arith.constant 0 : index
      %c1_56 = arith.constant 1 : index
      %97 = vector.load %arg15[%c0_55, %c1_56] : memref<32x2xf32, #tpu.memory_space<vmem>>, vector<32x1xf32>
      %98 = tpu.reciprocal %97 {approx = true} : vector<32x1xf32> -> vector<32x1xf32>
      %c0_57 = arith.constant 0 : index
      %c128_58 = arith.constant 128 : index
      %99 = vector.load %arg16[%c0_57, %c128_58] : memref<32x256xf32, #tpu.memory_space<vmem>>, vector<32x128xf32>
      %100 = vector.broadcast %98 : vector<32x1xf32> to vector<32x128xf32>
      %101 = arith.mulf %99, %100 : vector<32x128xf32>
      %c0_59 = arith.constant 0 : index
      %c128_60 = arith.constant 128 : index
      %102 = vector.load %arg16[%c0_59, %c128_60] : memref<32x256xf32, #tpu.memory_space<vmem>>, vector<32x128xf32>
      tpu.vector_store %arg16[%c0_59, %c128_60], %101 {strides = array<i32>} : memref<32x256xf32, #tpu.memory_space<vmem>>, vector<32x128xf32>,
      %c0_61 = arith.constant 0 : index
      %c0_62 = arith.constant 0 : index
      %103 = vector.load %arg16[%c0_61, %c0_62] : memref<32x256xf32, #tpu.memory_space<vmem>>, vector<32x256xf32>
      %104 = arith.truncf %103 : vector<32x256xf32> to vector<32x256xbf16>
      %c0_63 = arith.constant 0 : index
      %c0_64 = arith.constant 0 : index
      %105 = vector.load %arg10[%c0_63, %c0_64] : memref<256x128xbf16, #tpu.memory_space<vmem>>, vector<256x128xbf16>
      %cst_65 = arith.constant dense<0.000000e+00> : vector<32x128xf32>
      %106 = tpu.matmul %104, %105, %cst_65 {dimension_numbers = #tpu.dot_dimension_numbers<[1], [0], [0], [1], [0, 0, 1, 1], [], []>} : vector<32x256xbf16>, vector<256x128xbf16>, vector<32x128xf32> -> vector<32x128xf32>
      %c0_66 = arith.constant 0 : index
      %c0_67 = arith.constant 0 : index
      %107 = vector.load %arg11[%c0_66, %c0_67] : memref<1x128xf32, #tpu.memory_space<vmem>>, vector<1x128xf32>
      %108 = vector.broadcast %107 : vector<1x128xf32> to vector<32x128xf32>
      %109 = arith.addf %106, %108 : vector<32x128xf32>
      %c0_68 = arith.constant 0 : index
      %c0_69 = arith.constant 0 : index
      %c0_70 = arith.constant 0 : index
      %110 = vector.load %arg2[%c0_68, %c0_69, %c0_70] : memref<1x32x128xf32, #tpu.memory_space<vmem>>, vector<1x32x128xf32>
      %111 = vector.shape_cast %110 : vector<1x32x128xf32> to vector<32x128xf32>
      %112 = arith.addf %109, %111 : vector<32x128xf32>
      %c0_71 = arith.constant 0 : index
      %c0_72 = arith.constant 0 : index
      %c0_73 = arith.constant 0 : index
      %113 = vector.load %arg12[%c0_71, %c0_72, %c0_73] : memref<1x32x128xf32, #tpu.memory_space<vmem>>, vector<1x32x128xf32>
      %114 = vector.shape_cast %113 : vector<1x32x128xf32> to vector<32x128xf32>
      %115 = vector.shape_cast %112 : vector<32x128xf32> to vector<1x32x128xf32>
      tpu.vector_store %arg12[%c0_71, %c0_72, %c0_73], %115 {strides = array<i32>} : memref<1x32x128xf32, #tpu.memory_space<vmem>>, vector<1x32x128xf32>,
    } else {
    }
    return
  }
  func.func @transform_0(%arg0: i32, %arg1: i32) -> (i32, i32, i32) {
    %c0_i32 = arith.constant 0 : i32
    %c0_i32_0 = arith.constant 0 : i32
    %c0_i32_1 = arith.constant 0 : i32
    return %arg0, %c0_i32, %c0_i32_0 : i32, i32, i32
  }
  func.func @transform_1(%arg0: i32, %arg1: i32) -> (i32, i32, i32) {
    %c0_i32 = arith.constant 0 : i32
    %c0_i32_0 = arith.constant 0 : i32
    return %arg0, %arg1, %c0_i32 : i32, i32, i32
  }
  func.func @transform_2(%arg0: i32, %arg1: i32) -> (i32, i32) {
    %c0_i32 = arith.constant 0 : i32
    %c0_i32_0 = arith.constant 0 : i32
    %c0_i32_1 = arith.constant 0 : i32
    return %c0_i32, %c0_i32_0 : i32, i32
  }
  func.func @transform_3(%arg0: i32, %arg1: i32) -> (i32, i32) {
    %c0_i32 = arith.constant 0 : i32
    %c0_i32_0 = arith.constant 0 : i32
    %c0_i32_1 = arith.constant 0 : i32
    return %c0_i32, %c0_i32_0 : i32, i32
  }
  func.func @transform_4(%arg0: i32, %arg1: i32) -> (i32, i32) {
    %c0_i32 = arith.constant 0 : i32
    %c0_i32_0 = arith.constant 0 : i32
    %c0_i32_1 = arith.constant 0 : i32
    return %c0_i32, %c0_i32_0 : i32, i32
  }
  func.func @transform_5(%arg0: i32, %arg1: i32) -> (i32, i32) {
    %c0_i32 = arith.constant 0 : i32
    %c0_i32_0 = arith.constant 0 : i32
    %c0_i32_1 = arith.constant 0 : i32
    return %c0_i32, %c0_i32_0 : i32, i32
  }
  func.func @transform_6(%arg0: i32, %arg1: i32) -> (i32, i32) {
    %c0_i32 = arith.constant 0 : i32
    %c0_i32_0 = arith.constant 0 : i32
    %c0_i32_1 = arith.constant 0 : i32
    return %c0_i32, %c0_i32_0 : i32, i32
  }
  func.func @transform_7(%arg0: i32, %arg1: i32) -> (i32, i32) {
    %c0_i32 = arith.constant 0 : i32
    %c0_i32_0 = arith.constant 0 : i32
    %c0_i32_1 = arith.constant 0 : i32
    return %c0_i32, %c0_i32_0 : i32, i32
  }
  func.func @transform_8(%arg0: i32, %arg1: i32) -> (i32, i32) {
    %c0_i32 = arith.constant 0 : i32
    %c0_i32_0 = arith.constant 0 : i32
    %c0_i32_1 = arith.constant 0 : i32
    return %c0_i32, %c0_i32_0 : i32, i32
  }
  func.func @transform_9(%arg0: i32, %arg1: i32) -> (i32, i32) {
    %c0_i32 = arith.constant 0 : i32
    %c0_i32_0 = arith.constant 0 : i32
    %c0_i32_1 = arith.constant 0 : i32
    return %c0_i32, %c0_i32_0 : i32, i32
  }
  func.func @transform_10(%arg0: i32, %arg1: i32) -> (i32, i32, i32) {
    %c0_i32 = arith.constant 0 : i32
    %c0_i32_0 = arith.constant 0 : i32
    %c0_i32_1 = arith.constant 0 : i32
    return %arg0, %c0_i32, %c0_i32_0 : i32, i32, i32
  }
}

</mosaic_0001>

<llo_original>
// kernel: tpu_custom_call.1
$region0: #{tpu_custom_call.1}
  #allocation0 [shape = 'u32[]', space=smem, size = 0x4, offset = 0x4, fixed_abs, tag = 'smem constant byte address 0x4 - core index']
  #allocation1 [shape = 'u32[144,128]{1,0:T(1,128)}', space=vmem, size = 0x12000, scoped, tag = 'internal scratch']
  #allocation2 [shape = 'bf16[32,256]{1,0:T(16,128)(2,1)}', space=vmem, size = 0x4000, scoped, tag = 'scratch operand']
  #allocation3 [shape = 'f32[32,2]{1,0:T(8,128)}', space=vmem, size = 0x4000, scoped, tag = 'scratch operand']
  #allocation4 [shape = 'f32[32,2]{1,0:T(8,128)}', space=vmem, size = 0x4000, scoped, tag = 'scratch operand']
  #allocation5 [shape = 'f32[32,256]{1,0:T(8,128)}', space=vmem, size = 0x8000, scoped, tag = 'scratch operand']
  %s0 = inlined_call_operand.hbm [shape: f32[2,32,128], index: 0, kind: input, shape index: {}]
  %s1 = inlined_call_operand.hbm [shape: f32[2,32,128], index: 1, kind: input, shape index: {}]
  %s2 = inlined_call_operand.vmem [shape: f32[1,128], index: 2, kind: input, shape index: {}]
  %s3 = inlined_call_operand.vmem [shape: f32[1,128], index: 3, kind: input, shape index: {}]
  %s4 = inlined_call_operand.vmem [shape: f32[1,128], index: 4, kind: input, shape index: {}]
  %s5 = inlined_call_operand.vmem [shape: f32[1,128], index: 5, kind: input, shape index: {}]
  %s6 = inlined_call_operand.hbm [shape: bf16[128,256], index: 6, kind: input, shape index: {}]
  %s7 = inlined_call_operand.hbm [shape: bf16[128,512], index: 7, kind: input, shape index: {}]
  %s8 = inlined_call_operand.hbm [shape: bf16[256,128], index: 8, kind: input, shape index: {}]
  %s9 = inlined_call_operand.vmem [shape: f32[1,128], index: 9, kind: input, shape index: {}]
  %s10 = inlined_call_operand.hbm [shape: f32[2,32,128], index: 10, kind: output, shape index: {}]
  %s11 = sld [smem:[#allocation0]]
  $region101: #{tpu_custom_call.1} parent=0
    _
  %s13 = ssub.s32 1, %s11
  %s14 = scalar_select 0, %s13, %s11
  $region1: #{tpu_custom_call.1} parent=0
    #allocation6 [shape = 'u8[32768]{0}', space=vmem, size = 0x8000, scoped, tag = 'input window, operand 0']
    #allocation7 [shape = 's32[2]{0}', space=sflag, size = 0x8, scoped, tag = 'scoped memory for tpu_custom_call.1']
    #allocation8 [shape = 's32[2]{0}', space=sflag, size = 0x8, scoped, tag = 'scoped memory for tpu_custom_call.1']
    #allocation9 [shape = 'u8[16384]{0}', space=vmem, size = 0x4000, scoped, tag = 'input window, operand 1']
    #allocation10 [shape = 's32[2]{0}', space=sflag, size = 0x8, scoped, tag = 'scoped memory for tpu_custom_call.1']
    #allocation11 [shape = 'u8[65536]{0}', space=vmem, size = 0x10000, scoped, tag = 'input window, operand 6, single buffered']
    #allocation12 [shape = 'u8[131072]{0}', space=vmem, size = 0x20000, scoped, tag = 'input window, operand 7, single buffered']
    #allocation13 [shape = 's32[1]{0}', space=sflag, size = 0x4, scoped, tag = 'scoped memory for tpu_custom_call.1']
    #allocation14 [shape = 'u8[65536]{0}', space=vmem, size = 0x10000, scoped, tag = 'input window, operand 8, single buffered']
    #allocation15 [shape = 'u8[32768]{0}', space=vmem, size = 0x8000, scoped, tag = 'output window, operand 0']
    %15 = vsyncpa [#allocation7], 0
    %s16 = scalar_lea.sflag [#allocation7], 1
    %17 = vsyncpa %s16, 0
    %18 = vsyncpa [#allocation10], 0
    %s19 = scalar_lea.sflag [#allocation10], 1
    %20 = vsyncpa %s19, 0
    %21 = vsyncpa [#allocation13], 0
    %22 = vsyncpa [#allocation8], 0
    %s23 = scalar_lea.sflag [#allocation8], 1
    %24 = vsyncpa %s23, 0
    loop: start=0, step=1, limit=6
    $region2: #{tpu_custom_call.1} parent=1 // loop_pre_header
      _
    $region3: #{tpu_custom_call.1} parent=1 // loop_header
      %s26 = sphi 0, %s30
      %p27 = scmp.ge.s32.totalorder %s26, 6
      %s33 = sphi 0, %s45
      %s34 = sphi 0, %s41
      %s35 = sphi 0, %s33
      %s36 = sphi 0, %s34
      %s37 = sphi 0, %s35
      %s38 = sphi 0, %s36
      %s48 = sphi 0, %s50
      %s51 = sphi 0, %s48
      %s52 = sphi 0, %s51
      %s68 = sphi 0, %s52
      %s76 = sphi 0, %s78
      %s79 = sphi 0, %s76
      %s80 = sphi 0, %s79
      %s96 = sphi 0, %s80
      %s100 = sphi 0, %s100
      %s102 = sphi 0, %s100
      %s103 = sphi 0, %s102
      %s117 = sphi 0, %s103
      %s121 = sphi 0, %s121
      %s123 = sphi 0, %s121
      %s124 = sphi 0, %s123
      %s138 = sphi 0, %s124
      %s142 = sphi 0, %s142
      %s144 = sphi 0, %s142
      %s145 = sphi 0, %s144
      %s159 = sphi 0, %s145
      %s163 = sphi 0, %s163
      %s165 = sphi 0, %s163
      %s166 = sphi 0, %s165
      %s180 = sphi 0, %s166
      %s184 = sphi 0, %s184
      %s186 = sphi 0, %s184
      %s187 = sphi 0, %s186
      %s201 = sphi 0, %s187
      %s205 = sphi 0, %s205
      %s207 = sphi 0, %s205
      %s208 = sphi 0, %s207
      %s222 = sphi 0, %s208
      %s226 = sphi 0, %s226
      %s228 = sphi 0, %s226
      %s229 = sphi 0, %s228
      %s243 = sphi 0, %s229
      %s247 = sphi 0, %s247
      %s249 = sphi 0, %s247
      %s250 = sphi 0, %s249
      %s264 = sphi 0, %s250
      %s270 = sphi 0, %s272
      %s273 = sphi 0, %s270
      %s274 = sphi 0, %s273
      %s290 = sphi 0, %s274
    $region4: #{tpu_custom_call.1} parent=1 // loop_header_branch
      %29 = sbr.rel (%p27) target = $region8
    $region5: #{tpu_custom_call.1} parent=1 // loop_body
      %s31 = ssub.s32 %s26, 1
      %s32 = ssub.s32 %s26, 2
      %s39 = sadd.s32 1, %s34
      %p40 = scmp.ge.s32.totalorder %s39, 2
      %s41 = scalar_select %p40, 0, %s39
      %s42 = sadd.s32 1, %s33
      %s43 = scalar_select %p40, %s42, %s33
      %p44 = scmp.ge.s32.totalorder %s43, 2
      %s45 = scalar_select %p44, 0, %s43
      %s46 = ssub.s32 %s33, %s45
      %p47 = scmp.eq.s32.totalorder %s46, 0
      %s49 = sadd.s32 %s48, 1
      %s50 = scalar_select %p47, %s48, %s49
      %p53 = pneg %p47
      %p54 = scmp.eq.s32.totalorder %s26, 3
      %p55 = por %p53, %p54
      %p56 = scmp.ne.s32.totalorder %s48, %s51
      %p57 = scmp.eq.s32.totalorder %s26, 0
      %p58 = por %p56, %p57
      %p59 = scmp.ne.s32.totalorder %s48, %s51
      %p60 = scmp.eq.s32.totalorder %s31, 3
      %p61 = por %p59, %p60
      %p62 = scmp.ne.s32.totalorder %s51, %s52
      %p63 = scmp.eq.s32.totalorder %s31, 0
      %p64 = por %p62, %p63
      %p65 = scmp.ne.s32.totalorder %s51, %s52
      %p66 = scmp.eq.s32.totalorder %s32, 3
      %p67 = por %p65, %p66
      %p69 = scmp.ne.s32.totalorder %s52, %s68
      %p70 = scmp.eq.s32.totalorder %s32, 0
      %p71 = por %p69, %p70
      %s72 = ssub.s32 %s33, %s45
      %s73 = ssub.s32 %s34, %s41
      %s74 = sor.u32 %s72, %s73
      %p75 = scmp.eq.s32.totalorder %s74, 0
      %s77 = sadd.s32 %s76, 1
      %s78 = scalar_select %p75, %s76, %s77
      %p81 = pneg %p75
      %p82 = scmp.eq.s32.totalorder %s26, 3
      %p83 = por %p81, %p82
      %p84 = scmp.ne.s32.totalorder %s76, %s79
      %p85 = scmp.eq.s32.totalorder %s26, 0
      %p86 = por %p84, %p85
      %p87 = scmp.ne.s32.totalorder %s76, %s79
      %p88 = scmp.eq.s32.totalorder %s31, 3
      %p89 = por %p87, %p88
      %p90 = scmp.ne.s32.totalorder %s79, %s80
      %p91 = scmp.eq.s32.totalorder %s31, 0
      %p92 = por %p90, %p91
      %p93 = scmp.ne.s32.totalorder %s79, %s80
      %p94 = scmp.eq.s32.totalorder %s32, 3
      %p95 = por %p93, %p94
      %p97 = scmp.ne.s32.totalorder %s80, %s96
      %p98 = scmp.eq.s32.totalorder %s32, 0
      %p99 = por %p97, %p98
      %s101 = sadd.s32 %s100, 1
      %p104 = scmp.eq.s32.totalorder %s26, 3
      %p105 = scmp.ne.s32.totalorder %s100, %s102
      %p106 = scmp.eq.s32.totalorder %s26, 0
      %p107 = por %p105, %p106
      %p108 = scmp.ne.s32.totalorder %s100, %s102
      %p109 = scmp.eq.s32.totalorder %s31, 3
      %p110 = por %p108, %p109
      %p111 = scmp.ne.s32.totalorder %s102, %s103
      %p112 = scmp.eq.s32.totalorder %s31, 0
      %p113 = por %p111, %p112
      %p114 = scmp.ne.s32.totalorder %s102, %s103
      %p115 = scmp.eq.s32.totalorder %s32, 3
      %p116 = por %p114, %p115
      %p118 = scmp.ne.s32.totalorder %s103, %s117
      %p119 = scmp.eq.s32.totalorder %s32, 0
      %p120 = por %p118, %p119
      %s122 = sadd.s32 %s121, 1
      %p125 = scmp.eq.s32.totalorder %s26, 3
      %p126 = scmp.ne.s32.totalorder %s121, %s123
      %p127 = scmp.eq.s32.totalorder %s26, 0
      %p128 = por %p126, %p127
      %p129 = scmp.ne.s32.totalorder %s121, %s123
      %p130 = scmp.eq.s32.totalorder %s31, 3
      %p131 = por %p129, %p130
      %p132 = scmp.ne.s32.totalorder %s123, %s124
      %p133 = scmp.eq.s32.totalorder %s31, 0
      %p134 = por %p132, %p133
      %p135 = scmp.ne.s32.totalorder %s123, %s124
      %p136 = scmp.eq.s32.totalorder %s32, 3
      %p137 = por %p135, %p136
      %p139 = scmp.ne.s32.totalorder %s124, %s138
      %p140 = scmp.eq.s32.totalorder %s32, 0
      %p141 = por %p139, %p140
      %s143 = sadd.s32 %s142, 1
      %p146 = scmp.eq.s32.totalorder %s26, 3
      %p147 = scmp.ne.s32.totalorder %s142, %s144
      %p148 = scmp.eq.s32.totalorder %s26, 0
      %p149 = por %p147, %p148
      %p150 = scmp.ne.s32.totalorder %s142, %s144
      %p151 = scmp.eq.s32.totalorder %s31, 3
      %p152 = por %p150, %p151
      %p153 = scmp.ne.s32.totalorder %s144, %s145
      %p154 = scmp.eq.s32.totalorder %s31, 0
      %p155 = por %p153, %p154
      %p156 = scmp.ne.s32.totalorder %s144, %s145
      %p157 = scmp.eq.s32.totalorder %s32, 3
      %p158 = por %p156, %p157
      %p160 = scmp.ne.s32.totalorder %s145, %s159
      %p161 = scmp.eq.s32.totalorder %s32, 0
      %p162 = por %p160, %p161
      %s164 = sadd.s32 %s163, 1
      %p167 = scmp.eq.s32.totalorder %s26, 3
      %p168 = scmp.ne.s32.totalorder %s163, %s165
      %p169 = scmp.eq.s32.totalorder %s26, 0
      %p170 = por %p168, %p169
      %p171 = scmp.ne.s32.totalorder %s163, %s165
      %p172 = scmp.eq.s32.totalorder %s31, 3
      %p173 = por %p171, %p172
      %p174 = scmp.ne.s32.totalorder %s165, %s166
      %p175 = scmp.eq.s32.totalorder %s31, 0
      %p176 = por %p174, %p175
      %p177 = scmp.ne.s32.totalorder %s165, %s166
      %p178 = scmp.eq.s32.totalorder %s32, 3
      %p179 = por %p177, %p178
      %p181 = scmp.ne.s32.totalorder %s166, %s180
      %p182 = scmp.eq.s32.totalorder %s32, 0
      %p183 = por %p181, %p182
      %s185 = sadd.s32 %s184, 1
      %p188 = scmp.eq.s32.totalorder %s26, 3
      %p189 = scmp.ne.s32.totalorder %s184, %s186
      %p190 = scmp.eq.s32.totalorder %s26, 0
      %p191 = por %p189, %p190
      %p192 = scmp.ne.s32.totalorder %s184, %s186
      %p193 = scmp.eq.s32.totalorder %s31, 3
      %p194 = por %p192, %p193
      %p195 = scmp.ne.s32.totalorder %s186, %s187
      %p196 = scmp.eq.s32.totalorder %s31, 0
      %p197 = por %p195, %p196
      %p198 = scmp.ne.s32.totalorder %s186, %s187
      %p199 = scmp.eq.s32.totalorder %s32, 3
      %p200 = por %p198, %p199
      %p202 = scmp.ne.s32.totalorder %s187, %s201
      %p203 = scmp.eq.s32.totalorder %s32, 0
      %p204 = por %p202, %p203
      %s206 = sadd.s32 %s205, 1
      %p209 = scmp.eq.s32.totalorder %s26, 3
      %p210 = scmp.ne.s32.totalorder %s205, %s207
      %p211 = scmp.eq.s32.totalorder %s26, 0
      %p212 = por %p210, %p211
      %p213 = scmp.ne.s32.totalorder %s205, %s207
      %p214 = scmp.eq.s32.totalorder %s31, 3
      %p215 = por %p213, %p214
      %p216 = scmp.ne.s32.totalorder %s207, %s208
      %p217 = scmp.eq.s32.totalorder %s31, 0
      %p218 = por %p216, %p217
      %p219 = scmp.ne.s32.totalorder %s207, %s208
      %p220 = scmp.eq.s32.totalorder %s32, 3
      %p221 = por %p219, %p220
      %p223 = scmp.ne.s32.totalorder %s208, %s222
      %p224 = scmp.eq.s32.totalorder %s32, 0
      %p225 = por %p223, %p224
      %s227 = sadd.s32 %s226, 1
      %p230 = scmp.eq.s32.totalorder %s26, 3
      %p231 = scmp.ne.s32.totalorder %s226, %s228
      %p232 = scmp.eq.s32.totalorder %s26, 0
      %p233 = por %p231, %p232
      %p234 = scmp.ne.s32.totalorder %s226, %s228
      %p235 = scmp.eq.s32.totalorder %s31, 3
      %p236 = por %p234, %p235
      %p237 = scmp.ne.s32.totalorder %s228, %s229
      %p238 = scmp.eq.s32.totalorder %s31, 0
      %p239 = por %p237, %p238
      %p240 = scmp.ne.s32.totalorder %s228, %s229
      %p241 = scmp.eq.s32.totalorder %s32, 3
      %p242 = por %p240, %p241
      %p244 = scmp.ne.s32.totalorder %s229, %s243
      %p245 = scmp.eq.s32.totalorder %s32, 0
      %p246 = por %p244, %p245
      %s248 = sadd.s32 %s247, 1
      %p251 = scmp.eq.s32.totalorder %s26, 3
      %p252 = scmp.ne.s32.totalorder %s247, %s249
      %p253 = scmp.eq.s32.totalorder %s26, 0
      %p254 = por %p252, %p253
      %p255 = scmp.ne.s32.totalorder %s247, %s249
      %p256 = scmp.eq.s32.totalorder %s31, 3
      %p257 = por %p255, %p256
      %p258 = scmp.ne.s32.totalorder %s249, %s250
      %p259 = scmp.eq.s32.totalorder %s31, 0
      %p260 = por %p258, %p259
      %p261 = scmp.ne.s32.totalorder %s249, %s250
      %p262 = scmp.eq.s32.totalorder %s32, 3
      %p263 = por %p261, %p262
      %p265 = scmp.ne.s32.totalorder %s250, %s264
      %p266 = scmp.eq.s32.totalorder %s32, 0
      %p267 = por %p265, %p266
      %s268 = ssub.s32 %s33, %s45
      %p269 = scmp.eq.s32.totalorder %s268, 0
      %s271 = sadd.s32 %s270, 1
      %s272 = scalar_select %p269, %s270, %s271
      %p275 = pneg %p269
      %p276 = scmp.eq.s32.totalorder %s26, 3
      %p277 = por %p275, %p276
      %p278 = scmp.ne.s32.totalorder %s270, %s273
      %p279 = scmp.eq.s32.totalorder %s26, 0
      %p280 = por %p278, %p279
      %p281 = scmp.ne.s32.totalorder %s270, %s273
      %p282 = scmp.eq.s32.totalorder %s31, 3
      %p283 = por %p281, %p282
      %p284 = scmp.ne.s32.totalorder %s273, %s274
      %p285 = scmp.eq.s32.totalorder %s31, 0
      %p286 = por %p284, %p285
      %p287 = scmp.ne.s32.totalorder %s273, %s274
      %p288 = scmp.eq.s32.totalorder %s32, 3
      %p289 = por %p287, %p288
      %p291 = scmp.ne.s32.totalorder %s274, %s290
      %p292 = scmp.eq.s32.totalorder %s32, 0
      %p293 = por %p291, %p292
      %p294 = scmp.le.s32.totalorder 1, %s26
      %p295 = scmp.lt.s32.totalorder %s26, 5
      %p296 = pnand %p294, %p295
      %p297 = pneg %p296
      // Predicated region
      $region9: #{tpu_custom_call.1} parent=5 // pred_check
        _
      $region10: #{tpu_custom_call.1} parent=5 // pred_check_branch
        %299 = sbr.rel (%p296) target = $region12
      $region11: #{tpu_custom_call.1} parent=5 // pred_region
        %s300 = ssub.s32 %s26, 1
        // Predicated region
        $region13: #{tpu_custom_call.1} parent=11 // pred_check
          %p301 = pneg %p113
        $region14: #{tpu_custom_call.1} parent=11 // pred_check_branch
          %303 = sbr.rel (%p301) target = $region16
        $region15: #{tpu_custom_call.1} parent=11 // pred_region
          _
        $region16: #{tpu_custom_call.1} parent=11 // pred_fallthru
          _
        // Predicated region
        $region17: #{tpu_custom_call.1} parent=11 // pred_check
          %p304 = pneg %p134
        $region18: #{tpu_custom_call.1} parent=11 // pred_check_branch
          %306 = sbr.rel (%p304) target = $region20
        $region19: #{tpu_custom_call.1} parent=11 // pred_region
          _
        $region20: #{tpu_custom_call.1} parent=11 // pred_fallthru
          _
        // Predicated region
        $region21: #{tpu_custom_call.1} parent=11 // pred_check
          %p307 = pneg %p155
        $region22: #{tpu_custom_call.1} parent=11 // pred_check_branch
          %309 = sbr.rel (%p307) target = $region24
        $region23: #{tpu_custom_call.1} parent=11 // pred_region
          _
        $region24: #{tpu_custom_call.1} parent=11 // pred_fallthru
          _
        // Predicated region
        $region25: #{tpu_custom_call.1} parent=11 // pred_check
          %p310 = pneg %p176
        $region26: #{tpu_custom_call.1} parent=11 // pred_check_branch
          %312 = sbr.rel (%p310) target = $region28
        $region27: #{tpu_custom_call.1} parent=11 // pred_region
          _
        $region28: #{tpu_custom_call.1} parent=11 // pred_fallthru
          _
        // Predicated region
        $region29: #{tpu_custom_call.1} parent=11 // pred_check
          %p313 = pneg %p197
        $region30: #{tpu_custom_call.1} parent=11 // pred_check_branch
          %315 = sbr.rel (%p313) target = $region32
        $region31: #{tpu_custom_call.1} parent=11 // pred_region
          %s317 = ssub.s32 2048, 2048
          %318 = vsyncadd [#allocation10], %s317
          %s319 = sshll.u32 [#allocation11], 4
          %s320 = int_to_ptr.vmem [resolvable:$true] %s319
          %325 = dma.hbm_to_vmem [thread:$0]  %s6, 2048, %s320, [#allocation10], 128, 128, 8
        $region32: #{tpu_custom_call.1} parent=11 // pred_fallthru
          _
        // Predicated region
        $region33: #{tpu_custom_call.1} parent=11 // pred_check
          %p326 = pneg %p218
        $region34: #{tpu_custom_call.1} parent=11 // pred_check_branch
          %328 = sbr.rel (%p326) target = $region36
        $region35: #{tpu_custom_call.1} parent=11 // pred_region
          %s330 = ssub.s32 4096, 4096
          %331 = vsyncadd [#allocation13], %s330
          %s332 = sshll.u32 [#allocation12], 4
          %s333 = int_to_ptr.vmem [resolvable:$true] %s332
          %338 = dma.hbm_to_vmem [thread:$0]  %s7, 4096, %s333, [#allocation13], 256, 256, 16
        $region36: #{tpu_custom_call.1} parent=11 // pred_fallthru
          _
        // Predicated region
        $region37: #{tpu_custom_call.1} parent=11 // pred_check
          %p339 = pneg %p239
        $region38: #{tpu_custom_call.1} parent=11 // pred_check_branch
          %341 = sbr.rel (%p339) target = $region40
        $region39: #{tpu_custom_call.1} parent=11 // pred_region
          %s343 = ssub.s32 2048, 2048
          %344 = vsyncadd [#allocation13], %s343
          %s345 = sshll.u32 [#allocation14], 4
          %s346 = int_to_ptr.vmem [resolvable:$true] %s345
          %351 = dma.hbm_to_vmem [thread:$0]  %s8, 2048, %s346, [#allocation13], 64, 64, 4
        $region40: #{tpu_custom_call.1} parent=11 // pred_fallthru
          _
        // Predicated region
        $region41: #{tpu_custom_call.1} parent=11 // pred_check
          %p352 = pneg %p260
        $region42: #{tpu_custom_call.1} parent=11 // pred_check_branch
          %354 = sbr.rel (%p352) target = $region44
        $region43: #{tpu_custom_call.1} parent=11 // pred_region
          _
        $region44: #{tpu_custom_call.1} parent=11 // pred_fallthru
          _
      $region12: #{tpu_custom_call.1} parent=5 // pred_fallthru
        _
      %p355 = scmp.lt.s32.totalorder %s26, 4
      // Predicated region
      $region45: #{tpu_custom_call.1} parent=5 // pred_check
        %p356 = pneg %p355
      $region46: #{tpu_custom_call.1} parent=5 // pred_check_branch
        %358 = sbr.rel (%p356) target = $region48
      $region47: #{tpu_custom_call.1} parent=5 // pred_region
        // Predicated region
        $region49: #{tpu_custom_call.1} parent=47 // pred_check
          %p359 = pneg %p58
        $region50: #{tpu_custom_call.1} parent=47 // pred_check_branch
          %361 = sbr.rel (%p359) target = $region52
        $region51: #{tpu_custom_call.1} parent=47 // pred_region
          %s362 = sand.u32 %s48, 1
          %s363 = scalar_lea.sflag [#allocation7], %s362
          %s364 = sand.u32 %s48, 1
          %s365 = smul.addr %s364, 32
          %s366 = scalar_lea.vmem [#allocation6], %s365
          %s368 = ssub.s32 512, 512
          %369 = vsyncadd %s363, %s368
          %s370 = smul.addr %s33, 4
          %s371 = smul.addr %s370, 128
          %s372 = scalar_lea.hbm %s0, %s371
          %s373 = sshll.u32 %s366, 4
          %s374 = int_to_ptr.vmem [resolvable:$true] %s373
          %379 = dma.hbm_to_vmem [thread:$0]  %s372, 512, %s374, %s363, 128, 128, 8
        $region52: #{tpu_custom_call.1} parent=47 // pred_fallthru
          _
        // Predicated region
        $region53: #{tpu_custom_call.1} parent=47 // pred_check
          %p380 = pneg %p86
        $region54: #{tpu_custom_call.1} parent=47 // pred_check_branch
          %382 = sbr.rel (%p380) target = $region56
        $region55: #{tpu_custom_call.1} parent=47 // pred_region
          %s383 = sand.u32 %s26, 1
          %s384 = scalar_lea.sflag [#allocation10], %s383
          %s385 = sand.u32 %s76, 1
          %s386 = smul.addr %s385, 16
          %s387 = scalar_lea.vmem [#allocation9], %s386
          %s388 = smul.u32 2, %s34
          %s390 = ssub.s32 256, 256
          %391 = vsyncadd %s384, %s390
          %s392 = smul.addr %s33, 4
          %s393 = sadd.s32 %s388, %s392
          %s394 = smul.addr %s393, 128
          %s395 = scalar_lea.hbm %s1, %s394
          %s396 = sshll.u32 %s387, 4
          %s397 = int_to_ptr.vmem [resolvable:$true] %s396
          %402 = dma.hbm_to_vmem [thread:$0]  %s395, 256, %s397, %s384, 128, 128, 8
        $region56: #{tpu_custom_call.1} parent=47 // pred_fallthru
          _
      $region48: #{tpu_custom_call.1} parent=5 // pred_fallthru
        _
      %p403 = scmp.le.s32.totalorder 1, %s26
      %p404 = scmp.lt.s32.totalorder %s26, 5
      %p405 = pnand %p403, %p404
      %p406 = pneg %p405
      // Predicated region
      $region57: #{tpu_custom_call.1} parent=5 // pred_check
        _
      $region58: #{tpu_custom_call.1} parent=5 // pred_check_branch
        %408 = sbr.rel (%p405) target = $region60
      $region59: #{tpu_custom_call.1} parent=5 // pred_region
        %s409 = ssub.s32 %s26, 1
        %s410 = sand.u32 %s51, 1
        %s411 = scalar_lea.sflag [#allocation7], %s410
        %s412 = sand.u32 %s51, 1
        %s413 = smul.addr %s412, 32
        %s414 = scalar_lea.vmem [#allocation6], %s413
        // Predicated region
        $region61: #{tpu_custom_call.1} parent=59 // pred_check
          %p415 = pneg %p64
        $region62: #{tpu_custom_call.1} parent=59 // pred_check_branch
          %417 = sbr.rel (%p415) target = $region64
        $region63: #{tpu_custom_call.1} parent=59 // pred_region
          %418 = dma.done %s411, 512
        $region64: #{tpu_custom_call.1} parent=59 // pred_fallthru
          _
        %s419 = sand.u32 %s31, 1
        %s420 = scalar_lea.sflag [#allocation10], %s419
        %s421 = sand.u32 %s79, 1
        %s422 = smul.addr %s421, 16
        %s423 = scalar_lea.vmem [#allocation9], %s422
        // Predicated region
        $region65: #{tpu_custom_call.1} parent=59 // pred_check
          %p424 = pneg %p92
        $region66: #{tpu_custom_call.1} parent=59 // pred_check_branch
          %426 = sbr.rel (%p424) target = $region68
        $region67: #{tpu_custom_call.1} parent=59 // pred_region
          %427 = dma.done %s420, 256
        $region68: #{tpu_custom_call.1} parent=59 // pred_fallthru
          _
        // Predicated region
        $region69: #{tpu_custom_call.1} parent=59 // pred_check
          %p428 = pneg %p197
        $region70: #{tpu_custom_call.1} parent=59 // pred_check_branch
          %430 = sbr.rel (%p428) target = $region72
        $region71: #{tpu_custom_call.1} parent=59 // pred_region
          %431 = dma.done [#allocation10], 2048
        $region72: #{tpu_custom_call.1} parent=59 // pred_fallthru
          _
        // Predicated region
        $region73: #{tpu_custom_call.1} parent=59 // pred_check
          %p432 = pneg %p218
        $region74: #{tpu_custom_call.1} parent=59 // pred_check_branch
          %434 = sbr.rel (%p432) target = $region76
        $region75: #{tpu_custom_call.1} parent=59 // pred_region
          %435 = dma.done [#allocation13], 4096
        $region76: #{tpu_custom_call.1} parent=59 // pred_fallthru
          _
        // Predicated region
        $region77: #{tpu_custom_call.1} parent=59 // pred_check
          %p436 = pneg %p239
        $region78: #{tpu_custom_call.1} parent=59 // pred_check_branch
          %438 = sbr.rel (%p436) target = $region80
        $region79: #{tpu_custom_call.1} parent=59 // pred_region
          %439 = dma.done [#allocation13], 2048
        $region80: #{tpu_custom_call.1} parent=59 // pred_fallthru
          _
        %s440 = sand.u32 %s51, 1
        %s441 = scalar_lea.sflag [#allocation7], %s440
        %s442 = sand.u32 %s51, 1
        %s443 = smul.addr %s442, 32
        %s444 = scalar_lea.vmem [#allocation6], %s443
        %p445 = pneg %p64
        %p446 = pneg %p61
        %s447 = sand.u32 %s31, 1
        %s448 = scalar_lea.sflag [#allocation10], %s447
        %s449 = sand.u32 %s79, 1
        %s450 = smul.addr %s449, 16
        %s451 = scalar_lea.vmem [#allocation9], %s450
        %p452 = pneg %p92
        %p453 = pneg %p89
        %p454 = pneg %p113
        %p455 = pneg %p110
        %p456 = pneg %p134
        %p457 = pneg %p131
        %p458 = pneg %p155
        %p459 = pneg %p152
        %p460 = pneg %p176
        %p461 = pneg %p173
        %p462 = pneg %p197
        %p463 = pneg %p194
        %p464 = pneg %p218
        %p465 = pneg %p215
        %p466 = pneg %p239
        %p467 = pneg %p236
        %p468 = pneg %p260
        %p469 = pneg %p257
        %p470 = pneg %p286
        %p471 = pneg %p283
        %s472 = sand.u32 %s273, 1
        %s473 = scalar_lea.sflag [#allocation8], %s472
        %s474 = sand.u32 %s273, 1
        %s475 = smul.addr %s474, 32
        %s476 = scalar_lea.vmem [#allocation15], %s475
        %s477 = smul.u32 2, %s36
        %p479 = scmp.eq.s32.totalorder %s36, 0
        // Predicated region
        $region81: #{tpu_custom_call.1} parent=59 // pred_check
          %p480 = pneg %p479
        $region82: #{tpu_custom_call.1} parent=59 // pred_check_branch
          %482 = sbr.rel (%p480) target = $region84
        $region83: #{tpu_custom_call.1} parent=59 // pred_region
          %v483 = vld [vmem:[%s414] sm:$0xff]
          %v484 = vld [vmem:[%s414 + $0x8] sm:$0xff]
          %v485 = vld [vmem:[%s414 + $0x10] sm:$0xff]
          %v486 = vld [vmem:[%s414 + $0x18] sm:$0xff]
          %487 = vadd.xlane.f32.xlu0 %v483
          %v488 = vpop.xlane.xlu0 %487
          %489 = vadd.xlane.f32.xlu0 %v484
          %v490 = vpop.xlane.xlu0 %489
          %491 = vadd.xlane.f32.xlu0 %v485
          %v492 = vpop.xlane.xlu0 %491
          %493 = vadd.xlane.f32.xlu0 %v486
          %v494 = vpop.xlane.xlu0 %493
          %v495 = vrcp.pop 128.0
          %v496 = vmul.f32 %v488, %v495
          %v497 = vmul.f32 %v490, %v495
          %v498 = vmul.f32 %v492, %v495
          %v499 = vmul.f32 %v494, %v495
          %v500 = vsub.f32 %v483, %v496
          %v501 = vsub.f32 %v484, %v497
          %v502 = vsub.f32 %v485, %v498
          %v503 = vsub.f32 %v486, %v499
          %v504 = vmul.f32 %v500, %v500
          %v505 = vmul.f32 %v501, %v501
          %v506 = vmul.f32 %v502, %v502
          %v507 = vmul.f32 %v503, %v503
          %508 = vadd.xlane.f32.xlu0 %v504
          %v509 = vpop.xlane.xlu0 %508
          %510 = vadd.xlane.f32.xlu0 %v505
          %v511 = vpop.xlane.xlu0 %510
          %512 = vadd.xlane.f32.xlu0 %v506
          %v513 = vpop.xlane.xlu0 %512
          %514 = vadd.xlane.f32.xlu0 %v507
          %v515 = vpop.xlane.xlu0 %514
          %v516 = vmul.f32 %v509, %v495
          %v517 = vmul.f32 %v511, %v495
          %v518 = vmul.f32 %v513, %v495
          %v519 = vmul.f32 %v515, %v495
          %v520 = vadd.f32 %v516, 1e-05
          %v521 = vadd.f32 %v517, 1e-05
          %v522 = vadd.f32 %v518, 1e-05
          %v523 = vadd.f32 %v519, 1e-05
          %v524 = vrsqrt.pop %v520
          %v525 = vrsqrt.pop %v521
          %v526 = vrsqrt.pop %v522
          %v527 = vrsqrt.pop %v523
          %v528 = vmul.f32 %v500, %v524
          %v529 = vmul.f32 %v501, %v525
          %v530 = vmul.f32 %v502, %v526
          %v531 = vmul.f32 %v503, %v527
          %v532 = vld [vmem:[%s2] sm:$0x1]
          %v534 = vlaneseq
          %v535 = vshrl.u32 %v534, 7
          %v536 = vsub.s32 0, %v535
          %v537 = vrot.slane %v532, %v536
          %v539 = vmul.f32 %v528, %v537
          %v540 = vmul.f32 %v529, %v537
          %v541 = vmul.f32 %v530, %v537
          %v542 = vmul.f32 %v531, %v537
          %v543 = vld [vmem:[%s3] sm:$0x1]
          %v545 = vlaneseq
          %v546 = vshrl.u32 %v545, 7
          %v547 = vsub.s32 0, %v546
          %v548 = vrot.slane %v543, %v547
          %v550 = vadd.f32 %v539, %v548
          %v551 = vadd.f32 %v540, %v548
          %v552 = vadd.f32 %v541, %v548
          %v553 = vadd.f32 %v542, %v548
          %v554 = vpack.c.bf16 %v551, %v550
          %v555 = vpack.c.bf16 %v553, %v552
          %v556 = vld [vmem:[#allocation11] sm:$0xff]
          %v557 = vld [vmem:[#allocation11 + $0x8] sm:$0xff]
          %v558 = vld [vmem:[#allocation11 + $0x10] sm:$0xff]
          %v559 = vld [vmem:[#allocation11 + $0x18] sm:$0xff]
          %v560 = vld [vmem:[#allocation11 + $0x20] sm:$0xff]
          %v561 = vld [vmem:[#allocation11 + $0x28] sm:$0xff]
          %v562 = vld [vmem:[#allocation11 + $0x30] sm:$0xff]
          %v563 = vld [vmem:[#allocation11 + $0x38] sm:$0xff]
          %v564 = vld [vmem:[#allocation11 + $0x40] sm:$0xff]
          %v565 = vld [vmem:[#allocation11 + $0x48] sm:$0xff]
          %v566 = vld [vmem:[#allocation11 + $0x50] sm:$0xff]
          %v567 = vld [vmem:[#allocation11 + $0x58] sm:$0xff]
          %v568 = vld [vmem:[#allocation11 + $0x60] sm:$0xff]
          %v569 = vld [vmem:[#allocation11 + $0x68] sm:$0xff]
          %v570 = vld [vmem:[#allocation11 + $0x70] sm:$0xff]
          %v571 = vld [vmem:[#allocation11 + $0x78] sm:$0xff]
          %v588 = vunpack.c.l.b16 %v556
          %v589 = vunpack.c.h.b16 %v556
          %v590 = vunpack.c.l.b16 %v557
          %v591 = vunpack.c.h.b16 %v557
          %v592 = vunpack.c.l.b16 %v558
          %v593 = vunpack.c.h.b16 %v558
          %v594 = vunpack.c.l.b16 %v559
          %v595 = vunpack.c.h.b16 %v559
          %v596 = vunpack.c.l.b16 %v560
          %v597 = vunpack.c.h.b16 %v560
          %v598 = vunpack.c.l.b16 %v561
          %v599 = vunpack.c.h.b16 %v561
          %v600 = vunpack.c.l.b16 %v562
          %v601 = vunpack.c.h.b16 %v562
          %v602 = vunpack.c.l.b16 %v563
          %v603 = vunpack.c.h.b16 %v563
          %v604 = vunpack.c.l.b16 %v564
          %v605 = vunpack.c.h.b16 %v564
          %v606 = vunpack.c.l.b16 %v565
          %v607 = vunpack.c.h.b16 %v565
          %v608 = vunpack.c.l.b16 %v566
          %v609 = vunpack.c.h.b16 %v566
          %v610 = vunpack.c.l.b16 %v567
          %v611 = vunpack.c.h.b16 %v567
          %v612 = vunpack.c.l.b16 %v568
          %v613 = vunpack.c.h.b16 %v568
          %v614 = vunpack.c.l.b16 %v569
          %v615 = vunpack.c.h.b16 %v569
          %v616 = vunpack.c.l.b16 %v570
          %v617 = vunpack.c.h.b16 %v570
          %v618 = vunpack.c.l.b16 %v571
          %v619 = vunpack.c.h.b16 %v571
          %v620 = vpack.c.b16 %v590, %v588
          %v621 = vpack.c.b16 %v591, %v589
          %v622 = vpack.c.b16 %v594, %v592
          %v623 = vpack.c.b16 %v595, %v593
          %v624 = vpack.c.b16 %v598, %v596
          %v625 = vpack.c.b16 %v599, %v597
          %v626 = vpack.c.b16 %v602, %v600
          %v627 = vpack.c.b16 %v603, %v601
          %v628 = vpack.c.b16 %v606, %v604
          %v629 = vpack.c.b16 %v607, %v605
          %v630 = vpack.c.b16 %v610, %v608
          %v631 = vpack.c.b16 %v611, %v609
          %v632 = vpack.c.b16 %v614, %v612
          %v633 = vpack.c.b16 %v615, %v613
          %v634 = vpack.c.b16 %v618, %v616
          %v635 = vpack.c.b16 %v619, %v617
          %652 = vmatprep.subr.bf16.mxu0 %v621
          %653 = vmatpush1.bf16.msra.mxu0 %v620
          %654 = vmatprep.subr.bf16.mxu0 %v623
          %655 = vmatpush1.bf16.msra.mxu0 %v622
          %656 = vmatprep.subr.bf16.mxu0 %v625
          %657 = vmatpush1.bf16.msra.mxu0 %v624
          %658 = vmatprep.subr.bf16.mxu0 %v627
          %659 = vmatpush1.bf16.msra.mxu0 %v626
          %660 = vmatprep.subr.bf16.mxu0 %v629
          %661 = vmatpush1.bf16.msra.mxu0 %v628
          %662 = vmatprep.subr.bf16.mxu0 %v631
          %663 = vmatpush1.bf16.msra.mxu0 %v630
          %664 = vmatprep.subr.bf16.mxu0 %v633
          %665 = vmatpush1.bf16.msra.mxu0 %v632
          %666 = vmatprep.subr.bf16.mxu0 %v635
          %667 = vmatpush1.bf16.msra.mxu0 %v634
          %668 = vmatprep.subr.bf16.mxu0 0
          %669 = vmatpush1.bf16.msra.mxu0 0
          %670 = vmatprep.subr.bf16.mxu0 0
          %671 = vmatpush1.bf16.msra.mxu0 0
          %672 = vmatprep.subr.bf16.mxu0 0
          %673 = vmatpush1.bf16.msra.mxu0 0
          %674 = vmatprep.subr.bf16.mxu0 0
          %675 = vmatpush1.bf16.msra.mxu0 0
          %676 = vmatprep.subr.bf16.mxu0 0
          %677 = vmatpush1.bf16.msra.mxu0 0
          %678 = vmatprep.subr.bf16.mxu0 0
          %679 = vmatpush1.bf16.msra.mxu0 0
          %680 = vmatprep.subr.bf16.mxu0 0
          %681 = vmatpush1.bf16.msra.mxu0 0
          %682 = vmatprep.subr.bf16.mxu0 0
          %683 = vmatpush1.bf16.msra.mxu0 0
          %684 = vmatprep.mubr.bf16.mxu0 0
          %685 = vmatmul.mubr.bf16.gmra.mrb[0].mxu0 %v554
          %v686 = vpop.f32.mrb[0].mxu0
          %v687 = vadd.f32 0.0, %v686
          %v688 = vpop.f32.mrb[0].mxu0
          %v689 = vadd.f32 0.0, %v688
          %v690 = vpop.f32.mrb[0].mxu0
          %v691 = vadd.f32 0.0, %v690
          %v692 = vpop.f32.mrb[0].mxu0
          %v693 = vadd.f32 0.0, %v692
          %694 = vmatprep.mubr.bf16.mxu0 0
          %695 = vmatmul.mubr.bf16.gmra.mrb[0].mxu0 %v555
          %v696 = vpop.f32.mrb[0].mxu0
          %v697 = vadd.f32 0.0, %v696
          %v698 = vpop.f32.mrb[0].mxu0
          %v699 = vadd.f32 0.0, %v698
          %v700 = vpop.f32.mrb[0].mxu0
          %v701 = vadd.f32 0.0, %v700
          %v702 = vpop.f32.mrb[0].mxu0
          %v703 = vadd.f32 0.0, %v702
          %704 = vdwg.mxu0
          %v705 = vmul.f32 %v687, 0.088388346
          %v706 = vmul.f32 %v689, 0.088388346
          %v707 = vmul.f32 %v691, 0.088388346
          %v708 = vmul.f32 %v693, 0.088388346
          %v709 = vmul.f32 %v697, 0.088388346
          %v710 = vmul.f32 %v699, 0.088388346
          %v711 = vmul.f32 %v701, 0.088388346
          %v712 = vmul.f32 %v703, 0.088388346
          %v713 = vpack.c.bf16 %v707, %v705
          %v714 = vpack.c.bf16 %v708, %v706
          %v715 = vpack.c.bf16 %v711, %v709
          %v716 = vpack.c.bf16 %v712, %v710
          %717 = vst [vmem:[#allocation2] sm:$0xff] %v713
          %718 = vst [vmem:[#allocation2 + $0x8] sm:$0xff] %v714
          %719 = vst [vmem:[#allocation2 + $0x10] sm:$0xff] %v715
          %720 = vst [vmem:[#allocation2 + $0x18] sm:$0xff] %v716
          %vm721 = vcmask 15360
          %722 = vst.msk [vmem:[#allocation3] sm:$0xff] %vm721, -1e+30
          %723 = vst.msk [vmem:[#allocation3 + $0x8] sm:$0xff] %vm721, -1e+30
          %724 = vst.msk [vmem:[#allocation3 + $0x10] sm:$0xff] %vm721, -1e+30
          %725 = vst.msk [vmem:[#allocation3 + $0x18] sm:$0xff] %vm721, -1e+30
          %726 = vst.msk [vmem:[#allocation4] sm:$0xff] %vm721, 0.0
          %727 = vst.msk [vmem:[#allocation4 + $0x8] sm:$0xff] %vm721, 0.0
          %728 = vst.msk [vmem:[#allocation4 + $0x10] sm:$0xff] %vm721, 0.0
          %729 = vst.msk [vmem:[#allocation4 + $0x18] sm:$0xff] %vm721, 0.0
          %730 = vst [vmem:[#allocation5] sm:$0xff] 0.0
          %731 = vst [vmem:[#allocation5 + $0x8] sm:$0xff] 0.0
          %732 = vst [vmem:[#allocation5 + $0x10] sm:$0xff] 0.0
          %733 = vst [vmem:[#allocation5 + $0x18] sm:$0xff] 0.0
          %734 = vst [vmem:[#allocation5 + $0x20] sm:$0xff] 0.0
          %735 = vst [vmem:[#allocation5 + $0x28] sm:$0xff] 0.0
          %736 = vst [vmem:[#allocation5 + $0x30] sm:$0xff] 0.0
          %737 = vst [vmem:[#allocation5 + $0x38] sm:$0xff] 0.0
        $region84: #{tpu_custom_call.1} parent=59 // pred_fallthru
          _
        %v738 = vld [vmem:[%s423] sm:$0xff]
        %v739 = vld [vmem:[%s423 + $0x8] sm:$0xff]
        %740 = vadd.xlane.f32.xlu0 %v738
        %v741 = vpop.xlane.xlu0 %740
        %742 = vadd.xlane.f32.xlu0 %v739
        %v743 = vpop.xlane.xlu0 %742
        %v744 = vrcp.pop 128.0
        %v745 = vmul.f32 %v741, %v744
        %v746 = vmul.f32 %v743, %v744
        %v747 = vsub.f32 %v738, %v745
        %v748 = vsub.f32 %v739, %v746
        %v749 = vmul.f32 %v747, %v747
        %v750 = vmul.f32 %v748, %v748
        %751 = vadd.xlane.f32.xlu0 %v749
        %v752 = vpop.xlane.xlu0 %751
        %753 = vadd.xlane.f32.xlu0 %v750
        %v754 = vpop.xlane.xlu0 %753
        %v755 = vmul.f32 %v752, %v744
        %v756 = vmul.f32 %v754, %v744
        %v757 = vadd.f32 %v755, 1e-05
        %v758 = vadd.f32 %v756, 1e-05
        %v759 = vrsqrt.pop %v757
        %v760 = vrsqrt.pop %v758
        %v761 = vmul.f32 %v747, %v759
        %v762 = vmul.f32 %v748, %v760
        %v763 = vld [vmem:[%s4] sm:$0x1]
        %v765 = vlaneseq
        %v766 = vshrl.u32 %v765, 7
        %v767 = vsub.s32 0, %v766
        %v768 = vrot.slane %v763, %v767
        %v770 = vmul.f32 %v761, %v768
        %v771 = vmul.f32 %v762, %v768
        %v772 = vld [vmem:[%s5] sm:$0x1]
        %v774 = vlaneseq
        %v775 = vshrl.u32 %v774, 7
        %v776 = vsub.s32 0, %v775
        %v777 = vrot.slane %v772, %v776
        %v779 = vadd.f32 %v770, %v777
        %v780 = vadd.f32 %v771, %v777
        %v781 = vpack.c.bf16 %v780, %v779
        %v782 = vld [vmem:[#allocation12] sm:$0xff]
        %v783 = vld [vmem:[#allocation12 + $0x8] sm:$0xff]
        %v784 = vld [vmem:[#allocation12 + $0x10] sm:$0xff]
        %v785 = vld [vmem:[#allocation12 + $0x18] sm:$0xff]
        %v786 = vld [vmem:[#allocation12 + $0x20] sm:$0xff]
        %v787 = vld [vmem:[#allocation12 + $0x28] sm:$0xff]
        %v788 = vld [vmem:[#allocation12 + $0x30] sm:$0xff]
        %v789 = vld [vmem:[#allocation12 + $0x38] sm:$0xff]
        %v790 = vld [vmem:[#allocation12 + $0x40] sm:$0xff]
        %v791 = vld [vmem:[#allocation12 + $0x48] sm:$0xff]
        %v792 = vld [vmem:[#allocation12 + $0x50] sm:$0xff]
        %v793 = vld [vmem:[#allocation12 + $0x58] sm:$0xff]
        %v794 = vld [vmem:[#allocation12 + $0x60] sm:$0xff]
        %v795 = vld [vmem:[#allocation12 + $0x68] sm:$0xff]
        %v796 = vld [vmem:[#allocation12 + $0x70] sm:$0xff]
        %v797 = vld [vmem:[#allocation12 + $0x78] sm:$0xff]
        %v798 = vld [vmem:[#allocation12 + $0x80] sm:$0xff]
        %v799 = vld [vmem:[#allocation12 + $0x88] sm:$0xff]
        %v800 = vld [vmem:[#allocation12 + $0x90] sm:$0xff]
        %v801 = vld [vmem:[#allocation12 + $0x98] sm:$0xff]
        %v802 = vld [vmem:[#allocation12 + $0xa0] sm:$0xff]
        %v803 = vld [vmem:[#allocation12 + $0xa8] sm:$0xff]
        %v804 = vld [vmem:[#allocation12 + $0xb0] sm:$0xff]
        %v805 = vld [vmem:[#allocation12 + $0xb8] sm:$0xff]
        %v806 = vld [vmem:[#allocation12 + $0xc0] sm:$0xff]
        %v807 = vld [vmem:[#allocation12 + $0xc8] sm:$0xff]
        %v808 = vld [vmem:[#allocation12 + $0xd0] sm:$0xff]
        %v809 = vld [vmem:[#allocation12 + $0xd8] sm:$0xff]
        %v810 = vld [vmem:[#allocation12 + $0xe0] sm:$0xff]
        %v811 = vld [vmem:[#allocation12 + $0xe8] sm:$0xff]
        %v812 = vld [vmem:[#allocation12 + $0xf0] sm:$0xff]
        %v813 = vld [vmem:[#allocation12 + $0xf8] sm:$0xff]
        %v846 = vunpack.c.l.b16 %v782
        %v847 = vunpack.c.h.b16 %v782
        %v848 = vunpack.c.l.b16 %v783
        %v849 = vunpack.c.h.b16 %v783
        %v850 = vunpack.c.l.b16 %v784
        %v851 = vunpack.c.h.b16 %v784
        %v852 = vunpack.c.l.b16 %v785
        %v853 = vunpack.c.h.b16 %v785
        %v854 = vunpack.c.l.b16 %v786
        %v855 = vunpack.c.h.b16 %v786
        %v856 = vunpack.c.l.b16 %v787
        %v857 = vunpack.c.h.b16 %v787
        %v858 = vunpack.c.l.b16 %v788
        %v859 = vunpack.c.h.b16 %v788
        %v860 = vunpack.c.l.b16 %v789
        %v861 = vunpack.c.h.b16 %v789
        %v862 = vunpack.c.l.b16 %v790
        %v863 = vunpack.c.h.b16 %v790
        %v864 = vunpack.c.l.b16 %v791
        %v865 = vunpack.c.h.b16 %v791
        %v866 = vunpack.c.l.b16 %v792
        %v867 = vunpack.c.h.b16 %v792
        %v868 = vunpack.c.l.b16 %v793
        %v869 = vunpack.c.h.b16 %v793
        %v870 = vunpack.c.l.b16 %v794
        %v871 = vunpack.c.h.b16 %v794
        %v872 = vunpack.c.l.b16 %v795
        %v873 = vunpack.c.h.b16 %v795
        %v874 = vunpack.c.l.b16 %v796
        %v875 = vunpack.c.h.b16 %v796
        %v876 = vunpack.c.l.b16 %v797
        %v877 = vunpack.c.h.b16 %v797
        %v878 = vunpack.c.l.b16 %v798
        %v879 = vunpack.c.h.b16 %v798
        %v880 = vunpack.c.l.b16 %v799
        %v881 = vunpack.c.h.b16 %v799
        %v882 = vunpack.c.l.b16 %v800
        %v883 = vunpack.c.h.b16 %v800
        %v884 = vunpack.c.l.b16 %v801
        %v885 = vunpack.c.h.b16 %v801
        %v886 = vunpack.c.l.b16 %v802
        %v887 = vunpack.c.h.b16 %v802
        %v888 = vunpack.c.l.b16 %v803
        %v889 = vunpack.c.h.b16 %v803
        %v890 = vunpack.c.l.b16 %v804
        %v891 = vunpack.c.h.b16 %v804
        %v892 = vunpack.c.l.b16 %v805
        %v893 = vunpack.c.h.b16 %v805
        %v894 = vunpack.c.l.b16 %v806
        %v895 = vunpack.c.h.b16 %v806
        %v896 = vunpack.c.l.b16 %v807
        %v897 = vunpack.c.h.b16 %v807
        %v898 = vunpack.c.l.b16 %v808
        %v899 = vunpack.c.h.b16 %v808
        %v900 = vunpack.c.l.b16 %v809
        %v901 = vunpack.c.h.b16 %v809
        %v902 = vunpack.c.l.b16 %v810
        %v903 = vunpack.c.h.b16 %v810
        %v904 = vunpack.c.l.b16 %v811
        %v905 = vunpack.c.h.b16 %v811
        %v906 = vunpack.c.l.b16 %v812
        %v907 = vunpack.c.h.b16 %v812
        %v908 = vunpack.c.l.b16 %v813
        %v909 = vunpack.c.h.b16 %v813
        %v910 = vpack.c.b16 %v850, %v846
        %v911 = vpack.c.b16 %v851, %v847
        %v912 = vpack.c.b16 %v852, %v848
        %v913 = vpack.c.b16 %v853, %v849
        %v914 = vpack.c.b16 %v858, %v854
        %v915 = vpack.c.b16 %v859, %v855
        %v916 = vpack.c.b16 %v860, %v856
        %v917 = vpack.c.b16 %v861, %v857
        %v918 = vpack.c.b16 %v866, %v862
        %v919 = vpack.c.b16 %v867, %v863
        %v920 = vpack.c.b16 %v868, %v864
        %v921 = vpack.c.b16 %v869, %v865
        %v922 = vpack.c.b16 %v874, %v870
        %v923 = vpack.c.b16 %v875, %v871
        %v924 = vpack.c.b16 %v876, %v872
        %v925 = vpack.c.b16 %v877, %v873
        %v926 = vpack.c.b16 %v882, %v878
        %v927 = vpack.c.b16 %v883, %v879
        %v928 = vpack.c.b16 %v884, %v880
        %v929 = vpack.c.b16 %v885, %v881
        %v930 = vpack.c.b16 %v890, %v886
        %v931 = vpack.c.b16 %v891, %v887
        %v932 = vpack.c.b16 %v892, %v888
        %v933 = vpack.c.b16 %v893, %v889
        %v934 = vpack.c.b16 %v898, %v894
        %v935 = vpack.c.b16 %v899, %v895
        %v936 = vpack.c.b16 %v900, %v896
        %v937 = vpack.c.b16 %v901, %v897
        %v938 = vpack.c.b16 %v906, %v902
        %v939 = vpack.c.b16 %v907, %v903
        %v940 = vpack.c.b16 %v908, %v904
        %v941 = vpack.c.b16 %v909, %v905
        %974 = vmatprep.subr.bf16.mxu0 %v911
        %975 = vmatpush1.bf16.msra.mxu0 %v910
        %976 = vmatprep.subr.bf16.mxu0 %v915
        %977 = vmatpush1.bf16.msra.mxu0 %v914
        %978 = vmatprep.subr.bf16.mxu0 %v919
        %979 = vmatpush1.bf16.msra.mxu0 %v918
        %980 = vmatprep.subr.bf16.mxu0 %v923
        %981 = vmatpush1.bf16.msra.mxu0 %v922
        %982 = vmatprep.subr.bf16.mxu0 %v927
        %983 = vmatpush1.bf16.msra.mxu0 %v926
        %984 = vmatprep.subr.bf16.mxu0 %v931
        %985 = vmatpush1.bf16.msra.mxu0 %v930
        %986 = vmatprep.subr.bf16.mxu0 %v935
        %987 = vmatpush1.bf16.msra.mxu0 %v934
        %988 = vmatprep.subr.bf16.mxu0 %v939
        %989 = vmatpush1.bf16.msra.mxu0 %v938
        %990 = vmatprep.subr.bf16.mxu0 0
        %991 = vmatpush1.bf16.msra.mxu0 0
        %992 = vmatprep.subr.bf16.mxu0 0
        %993 = vmatpush1.bf16.msra.mxu0 0
        %994 = vmatprep.subr.bf16.mxu0 0
        %995 = vmatpush1.bf16.msra.mxu0 0
        %996 = vmatprep.subr.bf16.mxu0 0
        %997 = vmatpush1.bf16.msra.mxu0 0
        %998 = vmatprep.subr.bf16.mxu0 0
        %999 = vmatpush1.bf16.msra.mxu0 0
        %1000 = vmatprep.subr.bf16.mxu0 0
        %1001 = vmatpush1.bf16.msra.mxu0 0
        %1002 = vmatprep.subr.bf16.mxu0 0
        %1003 = vmatpush1.bf16.msra.mxu0 0
        %1004 = vmatprep.subr.bf16.mxu0 0
        %1005 = vmatpush1.bf16.msra.mxu0 0
        %1006 = vmatprep.mubr.bf16.mxu0 0
        %1007 = vmatmul.mubr.bf16.gmra.mrb[0].mxu0 %v781
        %v1008 = vpop.f32.mrb[0].mxu0
        %v1009 = vadd.f32 0.0, %v1008
        %v1010 = vpop.f32.mrb[0].mxu0
        %v1011 = vadd.f32 0.0, %v1010
        %v1012 = vpop.f32.mrb[0].mxu0
        %v1013 = vadd.f32 0.0, %v1012
        %v1014 = vpop.f32.mrb[0].mxu0
        %v1015 = vadd.f32 0.0, %v1014
        %1016 = vdwg.mxu0
        %1017 = vmatprep.subr.bf16.mxu0 %v913
        %1018 = vmatpush1.bf16.msra.mxu0 %v912
        %1019 = vmatprep.subr.bf16.mxu0 %v917
        %1020 = vmatpush1.bf16.msra.mxu0 %v916
        %1021 = vmatprep.subr.bf16.mxu0 %v921
        %1022 = vmatpush1.bf16.msra.mxu0 %v920
        %1023 = vmatprep.subr.bf16.mxu0 %v925
        %1024 = vmatpush1.bf16.msra.mxu0 %v924
        %1025 = vmatprep.subr.bf16.mxu0 %v929
        %1026 = vmatpush1.bf16.msra.mxu0 %v928
        %1027 = vmatprep.subr.bf16.mxu0 %v933
        %1028 = vmatpush1.bf16.msra.mxu0 %v932
        %1029 = vmatprep.subr.bf16.mxu0 %v937
        %1030 = vmatpush1.bf16.msra.mxu0 %v936
        %1031 = vmatprep.subr.bf16.mxu0 %v941
        %1032 = vmatpush1.bf16.msra.mxu0 %v940
        %1033 = vmatprep.subr.bf16.mxu0 0
        %1034 = vmatpush1.bf16.msra.mxu0 0
        %1035 = vmatprep.subr.bf16.mxu0 0
        %1036 = vmatpush1.bf16.msra.mxu0 0
        %1037 = vmatprep.subr.bf16.mxu0 0
        %1038 = vmatpush1.bf16.msra.mxu0 0
        %1039 = vmatprep.subr.bf16.mxu0 0
        %1040 = vmatpush1.bf16.msra.mxu0 0
        %1041 = vmatprep.subr.bf16.mxu0 0
        %1042 = vmatpush1.bf16.msra.mxu0 0
        %1043 = vmatprep.subr.bf16.mxu0 0
        %1044 = vmatpush1.bf16.msra.mxu0 0
        %1045 = vmatprep.subr.bf16.mxu0 0
        %1046 = vmatpush1.bf16.msra.mxu0 0
        %1047 = vmatprep.subr.bf16.mxu0 0
        %1048 = vmatpush1.bf16.msra.mxu0 0
        %1049 = vmatprep.mubr.bf16.mxu0 0
        %1050 = vmatmul.mubr.bf16.gmra.mrb[0].mxu0 %v781
        %v1051 = vpop.f32.mrb[0].mxu0
        %v1052 = vadd.f32 0.0, %v1051
        %v1053 = vpop.f32.mrb[0].mxu0
        %v1054 = vadd.f32 0.0, %v1053
        %v1055 = vpop.f32.mrb[0].mxu0
        %v1056 = vadd.f32 0.0, %v1055
        %v1057 = vpop.f32.mrb[0].mxu0
        %v1058 = vadd.f32 0.0, %v1057
        %1059 = vdwg.mxu0
        %v1060 = vpack.c.bf16 %v1013, %v1009
        %v1061 = vpack.c.bf16 %v1015, %v1011
        %v1062 = vpack.c.bf16 %v1056, %v1052
        %v1063 = vpack.c.bf16 %v1058, %v1054
        %v1064 = vld [vmem:[#allocation2] sm:$0xff]
        %v1065 = vld [vmem:[#allocation2 + $0x10] sm:$0xff]
        %1066 = vmatprep.subr.bf16.mxu0 0
        %1067 = vmatpush1.bf16.xpose.msra.mxu0 %v1060
        %1068 = vmatprep.subr.bf16.mxu0 0
        %1069 = vmatpush1.bf16.xpose.msra.mxu0 0
        %1070 = vmatprep.subr.bf16.mxu0 0
        %1071 = vmatpush1.bf16.xpose.msra.mxu0 0
        %1072 = vmatprep.subr.bf16.mxu0 0
        %1073 = vmatpush1.bf16.xpose.msra.mxu0 0
        %1074 = vmatprep.subr.bf16.mxu0 0
        %1075 = vmatpush1.bf16.xpose.msra.mxu0 0
        %1076 = vmatprep.subr.bf16.mxu0 0
        %1077 = vmatpush1.bf16.xpose.msra.mxu0 0
        %1078 = vmatprep.subr.bf16.mxu0 0
        %1079 = vmatpush1.bf16.xpose.msra.mxu0 0
        %1080 = vmatprep.subr.bf16.mxu0 0
        %1081 = vmatpush1.bf16.xpose.msra.mxu0 0
        %1082 = vmatprep.subr.bf16.mxu0 0
        %1083 = vmatpush1.bf16.xpose.msra.mxu0 0
        %1084 = vmatprep.subr.bf16.mxu0 0
        %1085 = vmatpush1.bf16.xpose.msra.mxu0 0
        %1086 = vmatprep.subr.bf16.mxu0 0
        %1087 = vmatpush1.bf16.xpose.msra.mxu0 0
        %1088 = vmatprep.subr.bf16.mxu0 0
        %1089 = vmatpush1.bf16.xpose.msra.mxu0 0
        %1090 = vmatprep.subr.bf16.mxu0 0
        %1091 = vmatpush1.bf16.xpose.msra.mxu0 0
        %1092 = vmatprep.subr.bf16.mxu0 0
        %1093 = vmatpush1.bf16.xpose.msra.mxu0 0
        %1094 = vmatprep.subr.bf16.mxu0 0
        %1095 = vmatpush1.bf16.xpose.msra.mxu0 0
        %1096 = vmatprep.subr.bf16.mxu0 0
        %1097 = vmatpush1.bf16.xpose.msra.mxu0 0
        %1098 = vmatprep.mubr.bf16.mxu0 0
        %1099 = vmatmul.mubr.bf16.gmra.mrb[0].mxu0 %v1064
        %v1100 = vpop.f32.mrb[0].mxu0
        %v1101 = vadd.f32 0.0, %v1100
        %v1102 = vpop.f32.mrb[0].mxu0
        %v1103 = vpop.f32.mrb[0].mxu0
        %v1104 = vadd.f32 0.0, %v1103
        %v1105 = vpop.f32.mrb[0].mxu0
        %1106 = vmatprep.mubr.bf16.mxu0 0
        %1107 = vmatmul.mubr.bf16.gmra.mrb[0].mxu0 %v1065
        %v1108 = vpop.f32.mrb[0].mxu0
        %v1109 = vadd.f32 0.0, %v1108
        %v1110 = vpop.f32.mrb[0].mxu0
        %v1111 = vpop.f32.mrb[0].mxu0
        %v1112 = vadd.f32 0.0, %v1111
        %v1113 = vpop.f32.mrb[0].mxu0
        %1114 = vdwg.mxu0
        %v1115 = vld [vmem:[#allocation3] sm:$0xff]
        %v1116 = vld [vmem:[#allocation3 + $0x8] sm:$0xff]
        %v1117 = vld [vmem:[#allocation3 + $0x10] sm:$0xff]
        %v1118 = vld [vmem:[#allocation3 + $0x18] sm:$0xff]
        %v1119 = vld [vmem:[#allocation4] sm:$0xff]
        %v1120 = vld [vmem:[#allocation4 + $0x8] sm:$0xff]
        %v1121 = vld [vmem:[#allocation4 + $0x10] sm:$0xff]
        %v1122 = vld [vmem:[#allocation4 + $0x18] sm:$0xff]
        %vm1123 = vcmask 130048
        %v1124 = vsel %vm1123, %v1101, -inf
        %1125 = vmax.xlane.f32.xlu0 %v1124
        %v1126 = vpop.xlane.xlu0 %1125
        %v1127 = vsel %vm1123, %v1104, -inf
        %1128 = vmax.xlane.f32.xlu0 %v1127
        %v1129 = vpop.xlane.xlu0 %1128
        %v1130 = vsel %vm1123, %v1109, -inf
        %1131 = vmax.xlane.f32.xlu0 %v1130
        %v1132 = vpop.xlane.xlu0 %1131
        %v1133 = vsel %vm1123, %v1112, -inf
        %1134 = vmax.xlane.f32.xlu0 %v1133
        %v1135 = vpop.xlane.xlu0 %1134
        %v1136 = vmax.f32 %v1115, %v1126
        %v1137 = vmax.f32 %v1116, %v1129
        %v1138 = vmax.f32 %v1117, %v1132
        %v1139 = vmax.f32 %v1118, %v1135
        %v1140 = vsub.f32 %v1115, %v1136
        %v1141 = vsub.f32 %v1116, %v1137
        %v1142 = vsub.f32 %v1117, %v1138
        %v1143 = vsub.f32 %v1118, %v1139
        %v1144 = vmul.f32 %v1140, 1.442695
        %v1145 = vpow.pop %v1144
        %v1146 = vmul.f32 %v1141, 1.442695
        %v1147 = vpow.pop %v1146
        %v1148 = vmul.f32 %v1142, 1.442695
        %v1149 = vpow.pop %v1148
        %v1150 = vmul.f32 %v1143, 1.442695
        %v1151 = vpow.pop %v1150
        %1153 = vset.pattern.permute.xlu0 0
        %1154 = vperm.xlu0 %1153, %v1136
        %v1155 = vpop.permute.xlu0 %1154
        %1158 = vset.pattern.permute.xlu0 0
        %1159 = vperm.xlu0 %1158, %v1137
        %v1160 = vpop.permute.xlu0 %1159
        %1163 = vset.pattern.permute.xlu0 0
        %1164 = vperm.xlu0 %1163, %v1138
        %v1165 = vpop.permute.xlu0 %1164
        %1168 = vset.pattern.permute.xlu0 0
        %1169 = vperm.xlu0 %1168, %v1139
        %v1170 = vpop.permute.xlu0 %1169
        %v1172 = vsub.f32 %v1101, %v1155
        %v1173 = vsub.f32 %v1104, %v1160
        %v1174 = vsub.f32 %v1109, %v1165
        %v1175 = vsub.f32 %v1112, %v1170
        %v1176 = vmul.f32 %v1172, 1.442695
        %v1177 = vpow.pop %v1176
        %v1178 = vmul.f32 %v1173, 1.442695
        %v1179 = vpow.pop %v1178
        %v1180 = vmul.f32 %v1174, 1.442695
        %v1181 = vpow.pop %v1180
        %v1182 = vmul.f32 %v1175, 1.442695
        %v1183 = vpow.pop %v1182
        %vm1184 = vcmask 7168
        %1185 = vst.msk [vmem:[#allocation3] sm:$0xff] %vm1184, %v1136
        %1186 = vst.msk [vmem:[#allocation3 + $0x8] sm:$0xff] %vm1184, %v1137
        %1187 = vst.msk [vmem:[#allocation3 + $0x10] sm:$0xff] %vm1184, %v1138
        %1188 = vst.msk [vmem:[#allocation3 + $0x18] sm:$0xff] %vm1184, %v1139
        %v1189 = vmul.f32 %v1145, %v1119
        %v1190 = vmul.f32 %v1147, %v1120
        %v1191 = vmul.f32 %v1149, %v1121
        %v1192 = vmul.f32 %v1151, %v1122
        %v1193 = vsel %vm1123, %v1177, 0.0
        %1194 = vadd.xlane.f32.xlu0 %v1193
        %v1195 = vpop.xlane.xlu0 %1194
        %v1196 = vsel %vm1123, %v1179, 0.0
        %1197 = vadd.xlane.f32.xlu0 %v1196
        %v1198 = vpop.xlane.xlu0 %1197
        %v1199 = vsel %vm1123, %v1181, 0.0
        %1200 = vadd.xlane.f32.xlu0 %v1199
        %v1201 = vpop.xlane.xlu0 %1200
        %v1202 = vsel %vm1123, %v1183, 0.0
        %1203 = vadd.xlane.f32.xlu0 %v1202
        %v1204 = vpop.xlane.xlu0 %1203
        %v1205 = vadd.f32 %v1189, %v1195
        %v1206 = vadd.f32 %v1190, %v1198
        %v1207 = vadd.f32 %v1191, %v1201
        %v1208 = vadd.f32 %v1192, %v1204
        %1209 = vst.msk [vmem:[#allocation4] sm:$0xff] %vm1184, %v1205
        %1210 = vst.msk [vmem:[#allocation4 + $0x8] sm:$0xff] %vm1184, %v1206
        %1211 = vst.msk [vmem:[#allocation4 + $0x10] sm:$0xff] %vm1184, %v1207
        %1212 = vst.msk [vmem:[#allocation4 + $0x18] sm:$0xff] %vm1184, %v1208
        %v1213 = vpack.c.bf16 %v1179, %v1177
        %v1214 = vpack.c.bf16 %v1183, %v1181
        %v1216 = vsel %vm1123, %v1213, 0
        %v1219 = vsel %vm1123, %v1214, 0
        %1221 = vmatprep.subr.bf16.mxu0 0
        %1222 = vmatpush1.bf16.msra.mxu0 %v1062
        %1223 = vmatprep.subr.bf16.mxu0 0
        %1224 = vmatpush1.bf16.msra.mxu0 0
        %1225 = vmatprep.subr.bf16.mxu0 0
        %1226 = vmatpush1.bf16.msra.mxu0 0
        %1227 = vmatprep.subr.bf16.mxu0 0
        %1228 = vmatpush1.bf16.msra.mxu0 0
        %1229 = vmatprep.subr.bf16.mxu0 0
        %1230 = vmatpush1.bf16.msra.mxu0 0
        %1231 = vmatprep.subr.bf16.mxu0 0
        %1232 = vmatpush1.bf16.msra.mxu0 0
        %1233 = vmatprep.subr.bf16.mxu0 0
        %1234 = vmatpush1.bf16.msra.mxu0 0
        %1235 = vmatprep.subr.bf16.mxu0 0
        %1236 = vmatpush1.bf16.msra.mxu0 0
        %1237 = vmatprep.subr.bf16.mxu0 0
        %1238 = vmatpush1.bf16.msra.mxu0 0
        %1239 = vmatprep.subr.bf16.mxu0 0
        %1240 = vmatpush1.bf16.msra.mxu0 0
        %1241 = vmatprep.subr.bf16.mxu0 0
        %1242 = vmatpush1.bf16.msra.mxu0 0
        %1243 = vmatprep.subr.bf16.mxu0 0
        %1244 = vmatpush1.bf16.msra.mxu0 0
        %1245 = vmatprep.subr.bf16.mxu0 0
        %1246 = vmatpush1.bf16.msra.mxu0 0
        %1247 = vmatprep.subr.bf16.mxu0 0
        %1248 = vmatpush1.bf16.msra.mxu0 0
        %1249 = vmatprep.subr.bf16.mxu0 0
        %1250 = vmatpush1.bf16.msra.mxu0 0
        %1251 = vmatprep.subr.bf16.mxu0 0
        %1252 = vmatpush1.bf16.msra.mxu0 0
        %1253 = vmatprep.mubr.bf16.mxu0 0
        %1254 = vmatmul.mubr.bf16.gmra.mrb[0].mxu0 %v1216
        %v1255 = vpop.f32.mrb[0].mxu0
        %v1256 = vadd.f32 0.0, %v1255
        %v1257 = vpop.f32.mrb[0].mxu0
        %v1258 = vpop.f32.mrb[0].mxu0
        %v1259 = vadd.f32 0.0, %v1258
        %v1260 = vpop.f32.mrb[0].mxu0
        %1261 = vmatprep.mubr.bf16.mxu0 0
        %1262 = vmatmul.mubr.bf16.gmra.mrb[0].mxu0 %v1219
        %v1263 = vpop.f32.mrb[0].mxu0
        %v1264 = vadd.f32 0.0, %v1263
        %v1265 = vpop.f32.mrb[0].mxu0
        %v1266 = vpop.f32.mrb[0].mxu0
        %v1267 = vadd.f32 0.0, %v1266
        %v1268 = vpop.f32.mrb[0].mxu0
        %1269 = vdwg.mxu0
        %v1270 = vld [vmem:[#allocation5] sm:$0xff]
        %v1271 = vld [vmem:[#allocation5 + $0x10] sm:$0xff]
        %v1272 = vld [vmem:[#allocation5 + $0x20] sm:$0xff]
        %v1273 = vld [vmem:[#allocation5 + $0x30] sm:$0xff]
        %1275 = vset.pattern.permute.xlu0 0
        %1276 = vperm.xlu0 %1275, %v1145
        %v1277 = vpop.permute.xlu0 %1276
        %1280 = vset.pattern.permute.xlu0 0
        %1281 = vperm.xlu0 %1280, %v1147
        %v1282 = vpop.permute.xlu0 %1281
        %1285 = vset.pattern.permute.xlu0 0
        %1286 = vperm.xlu0 %1285, %v1149
        %v1287 = vpop.permute.xlu0 %1286
        %1290 = vset.pattern.permute.xlu0 0
        %1291 = vperm.xlu0 %1290, %v1151
        %v1292 = vpop.permute.xlu0 %1291
        %v1294 = vmul.f32 %v1277, %v1270
        %v1295 = vmul.f32 %v1282, %v1271
        %v1296 = vmul.f32 %v1287, %v1272
        %v1297 = vmul.f32 %v1292, %v1273
        %v1298 = vadd.f32 %v1294, %v1256
        %v1299 = vadd.f32 %v1295, %v1259
        %v1300 = vadd.f32 %v1296, %v1264
        %v1301 = vadd.f32 %v1297, %v1267
        %1302 = vst [vmem:[#allocation5] sm:$0xff] %v1298
        %1303 = vst [vmem:[#allocation5 + $0x10] sm:$0xff] %v1299
        %1304 = vst [vmem:[#allocation5 + $0x20] sm:$0xff] %v1300
        %1305 = vst [vmem:[#allocation5 + $0x30] sm:$0xff] %v1301
        %v1306 = vld [vmem:[#allocation2 + $0x8] sm:$0xff]
        %v1307 = vld [vmem:[#allocation2 + $0x18] sm:$0xff]
        %1308 = vmatprep.subr.bf16.mxu0 0
        %1309 = vmatpush1.bf16.xpose.msra.mxu0 %v1061
        %1310 = vmatprep.subr.bf16.mxu0 0
        %1311 = vmatpush1.bf16.xpose.msra.mxu0 0
        %1312 = vmatprep.subr.bf16.mxu0 0
        %1313 = vmatpush1.bf16.xpose.msra.mxu0 0
        %1314 = vmatprep.subr.bf16.mxu0 0
        %1315 = vmatpush1.bf16.xpose.msra.mxu0 0
        %1316 = vmatprep.subr.bf16.mxu0 0
        %1317 = vmatpush1.bf16.xpose.msra.mxu0 0
        %1318 = vmatprep.subr.bf16.mxu0 0
        %1319 = vmatpush1.bf16.xpose.msra.mxu0 0
        %1320 = vmatprep.subr.bf16.mxu0 0
        %1321 = vmatpush1.bf16.xpose.msra.mxu0 0
        %1322 = vmatprep.subr.bf16.mxu0 0
        %1323 = vmatpush1.bf16.xpose.msra.mxu0 0
        %1324 = vmatprep.subr.bf16.mxu0 0
        %1325 = vmatpush1.bf16.xpose.msra.mxu0 0
        %1326 = vmatprep.subr.bf16.mxu0 0
        %1327 = vmatpush1.bf16.xpose.msra.mxu0 0
        %1328 = vmatprep.subr.bf16.mxu0 0
        %1329 = vmatpush1.bf16.xpose.msra.mxu0 0
        %1330 = vmatprep.subr.bf16.mxu0 0
        %1331 = vmatpush1.bf16.xpose.msra.mxu0 0
        %1332 = vmatprep.subr.bf16.mxu0 0
        %1333 = vmatpush1.bf16.xpose.msra.mxu0 0
        %1334 = vmatprep.subr.bf16.mxu0 0
        %1335 = vmatpush1.bf16.xpose.msra.mxu0 0
        %1336 = vmatprep.subr.bf16.mxu0 0
        %1337 = vmatpush1.bf16.xpose.msra.mxu0 0
        %1338 = vmatprep.subr.bf16.mxu0 0
        %1339 = vmatpush1.bf16.xpose.msra.mxu0 0
        %1340 = vmatprep.mubr.bf16.mxu0 0
        %1341 = vmatmul.mubr.bf16.gmra.mrb[0].mxu0 %v1306
        %v1342 = vpop.f32.mrb[0].mxu0
        %v1343 = vadd.f32 0.0, %v1342
        %v1344 = vpop.f32.mrb[0].mxu0
        %v1345 = vpop.f32.mrb[0].mxu0
        %v1346 = vadd.f32 0.0, %v1345
        %v1347 = vpop.f32.mrb[0].mxu0
        %1348 = vmatprep.mubr.bf16.mxu0 0
        %1349 = vmatmul.mubr.bf16.gmra.mrb[0].mxu0 %v1307
        %v1350 = vpop.f32.mrb[0].mxu0
        %v1351 = vadd.f32 0.0, %v1350
        %v1352 = vpop.f32.mrb[0].mxu0
        %v1353 = vpop.f32.mrb[0].mxu0
        %v1354 = vadd.f32 0.0, %v1353
        %v1355 = vpop.f32.mrb[0].mxu0
        %1356 = vdwg.mxu0
        %v1357 = vld [vmem:[#allocation3] sm:$0xff]
        %v1358 = vld [vmem:[#allocation3 + $0x8] sm:$0xff]
        %v1359 = vld [vmem:[#allocation3 + $0x10] sm:$0xff]
        %v1360 = vld [vmem:[#allocation3 + $0x18] sm:$0xff]
        %v1361 = vld [vmem:[#allocation4] sm:$0xff]
        %v1362 = vld [vmem:[#allocation4 + $0x8] sm:$0xff]
        %v1363 = vld [vmem:[#allocation4 + $0x10] sm:$0xff]
        %v1364 = vld [vmem:[#allocation4 + $0x18] sm:$0xff]
        %v1365 = vsel %vm1123, %v1343, -inf
        %1366 = vmax.xlane.f32.xlu0 %v1365
        %v1367 = vpop.xlane.xlu0 %1366
        %v1368 = vsel %vm1123, %v1346, -inf
        %1369 = vmax.xlane.f32.xlu0 %v1368
        %v1370 = vpop.xlane.xlu0 %1369
        %v1371 = vsel %vm1123, %v1351, -inf
        %1372 = vmax.xlane.f32.xlu0 %v1371
        %v1373 = vpop.xlane.xlu0 %1372
        %v1374 = vsel %vm1123, %v1354, -inf
        %1375 = vmax.xlane.f32.xlu0 %v1374
        %v1376 = vpop.xlane.xlu0 %1375
        %v1377 = vmax.f32 %v1357, %v1367
        %v1378 = vmax.f32 %v1358, %v1370
        %v1379 = vmax.f32 %v1359, %v1373
        %v1380 = vmax.f32 %v1360, %v1376
        %v1381 = vsub.f32 %v1357, %v1377
        %v1382 = vsub.f32 %v1358, %v1378
        %v1383 = vsub.f32 %v1359, %v1379
        %v1384 = vsub.f32 %v1360, %v1380
        %v1385 = vmul.f32 %v1381, 1.442695
        %v1386 = vpow.pop %v1385
        %v1387 = vmul.f32 %v1382, 1.442695
        %v1388 = vpow.pop %v1387
        %v1389 = vmul.f32 %v1383, 1.442695
        %v1390 = vpow.pop %v1389
        %v1391 = vmul.f32 %v1384, 1.442695
        %v1392 = vpow.pop %v1391
        %1394 = vset.pattern.permute.xlu0 1
        %1395 = vperm.xlu0 %1394, %v1377
        %v1396 = vpop.permute.xlu0 %1395
        %1399 = vset.pattern.permute.xlu0 1
        %1400 = vperm.xlu0 %1399, %v1378
        %v1401 = vpop.permute.xlu0 %1400
        %1404 = vset.pattern.permute.xlu0 1
        %1405 = vperm.xlu0 %1404, %v1379
        %v1406 = vpop.permute.xlu0 %1405
        %1409 = vset.pattern.permute.xlu0 1
        %1410 = vperm.xlu0 %1409, %v1380
        %v1411 = vpop.permute.xlu0 %1410
        %v1413 = vsub.f32 %v1343, %v1396
        %v1414 = vsub.f32 %v1346, %v1401
        %v1415 = vsub.f32 %v1351, %v1406
        %v1416 = vsub.f32 %v1354, %v1411
        %v1417 = vmul.f32 %v1413, 1.442695
        %v1418 = vpow.pop %v1417
        %v1419 = vmul.f32 %v1414, 1.442695
        %v1420 = vpow.pop %v1419
        %v1421 = vmul.f32 %v1415, 1.442695
        %v1422 = vpow.pop %v1421
        %v1423 = vmul.f32 %v1416, 1.442695
        %v1424 = vpow.pop %v1423
        %vm1425 = vcmask 15368
        %1426 = vst.msk [vmem:[#allocation3] sm:$0xff] %vm1425, %v1377
        %1427 = vst.msk [vmem:[#allocation3 + $0x8] sm:$0xff] %vm1425, %v1378
        %1428 = vst.msk [vmem:[#allocation3 + $0x10] sm:$0xff] %vm1425, %v1379
        %1429 = vst.msk [vmem:[#allocation3 + $0x18] sm:$0xff] %vm1425, %v1380
        %v1430 = vmul.f32 %v1386, %v1361
        %v1431 = vmul.f32 %v1388, %v1362
        %v1432 = vmul.f32 %v1390, %v1363
        %v1433 = vmul.f32 %v1392, %v1364
        %v1434 = vsel %vm1123, %v1418, 0.0
        %1435 = vadd.xlane.f32.xlu0 %v1434
        %v1436 = vpop.xlane.xlu0 %1435
        %v1437 = vsel %vm1123, %v1420, 0.0
        %1438 = vadd.xlane.f32.xlu0 %v1437
        %v1439 = vpop.xlane.xlu0 %1438
        %v1440 = vsel %vm1123, %v1422, 0.0
        %1441 = vadd.xlane.f32.xlu0 %v1440
        %v1442 = vpop.xlane.xlu0 %1441
        %v1443 = vsel %vm1123, %v1424, 0.0
        %1444 = vadd.xlane.f32.xlu0 %v1443
        %v1445 = vpop.xlane.xlu0 %1444
        %v1446 = vadd.f32 %v1430, %v1436
        %v1447 = vadd.f32 %v1431, %v1439
        %v1448 = vadd.f32 %v1432, %v1442
        %v1449 = vadd.f32 %v1433, %v1445
        %1450 = vst.msk [vmem:[#allocation4] sm:$0xff] %vm1425, %v1446
        %1451 = vst.msk [vmem:[#allocation4 + $0x8] sm:$0xff] %vm1425, %v1447
        %1452 = vst.msk [vmem:[#allocation4 + $0x10] sm:$0xff] %vm1425, %v1448
        %1453 = vst.msk [vmem:[#allocation4 + $0x18] sm:$0xff] %vm1425, %v1449
        %v1454 = vpack.c.bf16 %v1420, %v1418
        %v1455 = vpack.c.bf16 %v1424, %v1422
        %v1457 = vsel %vm1123, %v1454, 0
        %v1460 = vsel %vm1123, %v1455, 0
        %1462 = vmatprep.subr.bf16.mxu0 0
        %1463 = vmatpush1.bf16.msra.mxu0 %v1063
        %1464 = vmatprep.subr.bf16.mxu0 0
        %1465 = vmatpush1.bf16.msra.mxu0 0
        %1466 = vmatprep.subr.bf16.mxu0 0
        %1467 = vmatpush1.bf16.msra.mxu0 0
        %1468 = vmatprep.subr.bf16.mxu0 0
        %1469 = vmatpush1.bf16.msra.mxu0 0
        %1470 = vmatprep.subr.bf16.mxu0 0
        %1471 = vmatpush1.bf16.msra.mxu0 0
        %1472 = vmatprep.subr.bf16.mxu0 0
        %1473 = vmatpush1.bf16.msra.mxu0 0
        %1474 = vmatprep.subr.bf16.mxu0 0
        %1475 = vmatpush1.bf16.msra.mxu0 0
        %1476 = vmatprep.subr.bf16.mxu0 0
        %1477 = vmatpush1.bf16.msra.mxu0 0
        %1478 = vmatprep.subr.bf16.mxu0 0
        %1479 = vmatpush1.bf16.msra.mxu0 0
        %1480 = vmatprep.subr.bf16.mxu0 0
        %1481 = vmatpush1.bf16.msra.mxu0 0
        %1482 = vmatprep.subr.bf16.mxu0 0
        %1483 = vmatpush1.bf16.msra.mxu0 0
        %1484 = vmatprep.subr.bf16.mxu0 0
        %1485 = vmatpush1.bf16.msra.mxu0 0
        %1486 = vmatprep.subr.bf16.mxu0 0
        %1487 = vmatpush1.bf16.msra.mxu0 0
        %1488 = vmatprep.subr.bf16.mxu0 0
        %1489 = vmatpush1.bf16.msra.mxu0 0
        %1490 = vmatprep.subr.bf16.mxu0 0
        %1491 = vmatpush1.bf16.msra.mxu0 0
        %1492 = vmatprep.subr.bf16.mxu0 0
        %1493 = vmatpush1.bf16.msra.mxu0 0
        %1494 = vmatprep.mubr.bf16.mxu0 0
        %1495 = vmatmul.mubr.bf16.gmra.mrb[0].mxu0 %v1457
        %v1496 = vpop.f32.mrb[0].mxu0
        %v1497 = vadd.f32 0.0, %v1496
        %v1498 = vpop.f32.mrb[0].mxu0
        %v1499 = vpop.f32.mrb[0].mxu0
        %v1500 = vadd.f32 0.0, %v1499
        %v1501 = vpop.f32.mrb[0].mxu0
        %1502 = vmatprep.mubr.bf16.mxu0 0
        %1503 = vmatmul.mubr.bf16.gmra.mrb[0].mxu0 %v1460
        %v1504 = vpop.f32.mrb[0].mxu0
        %v1505 = vadd.f32 0.0, %v1504
        %v1506 = vpop.f32.mrb[0].mxu0
        %v1507 = vpop.f32.mrb[0].mxu0
        %v1508 = vadd.f32 0.0, %v1507
        %v1509 = vpop.f32.mrb[0].mxu0
        %1510 = vdwg.mxu0
        %v1511 = vld [vmem:[#allocation5 + $0x8] sm:$0xff]
        %v1512 = vld [vmem:[#allocation5 + $0x18] sm:$0xff]
        %v1513 = vld [vmem:[#allocation5 + $0x28] sm:$0xff]
        %v1514 = vld [vmem:[#allocation5 + $0x38] sm:$0xff]
        %1516 = vset.pattern.permute.xlu0 1
        %1517 = vperm.xlu0 %1516, %v1386
        %v1518 = vpop.permute.xlu0 %1517
        %1521 = vset.pattern.permute.xlu0 1
        %1522 = vperm.xlu0 %1521, %v1388
        %v1523 = vpop.permute.xlu0 %1522
        %1526 = vset.pattern.permute.xlu0 1
        %1527 = vperm.xlu0 %1526, %v1390
        %v1528 = vpop.permute.xlu0 %1527
        %1531 = vset.pattern.permute.xlu0 1
        %1532 = vperm.xlu0 %1531, %v1392
        %v1533 = vpop.permute.xlu0 %1532
        %v1535 = vmul.f32 %v1518, %v1511
        %v1536 = vmul.f32 %v1523, %v1512
        %v1537 = vmul.f32 %v1528, %v1513
        %v1538 = vmul.f32 %v1533, %v1514
        %v1539 = vadd.f32 %v1535, %v1497
        %v1540 = vadd.f32 %v1536, %v1500
        %v1541 = vadd.f32 %v1537, %v1505
        %v1542 = vadd.f32 %v1538, %v1508
        %1543 = vst [vmem:[#allocation5 + $0x8] sm:$0xff] %v1539
        %1544 = vst [vmem:[#allocation5 + $0x18] sm:$0xff] %v1540
        %1545 = vst [vmem:[#allocation5 + $0x28] sm:$0xff] %v1541
        %1546 = vst [vmem:[#allocation5 + $0x38] sm:$0xff] %v1542
        %p1547 = scmp.eq.s32.totalorder %s36, 1
        // Predicated region
        $region85: #{tpu_custom_call.1} parent=59 // pred_check
          %p1548 = pneg %p1547
        $region86: #{tpu_custom_call.1} parent=59 // pred_check_branch
          %1550 = sbr.rel (%p1548) target = $region88
        $region87: #{tpu_custom_call.1} parent=59 // pred_region
          %v1551 = vld [vmem:[#allocation4] sm:$0xff]
          %v1552 = vld [vmem:[#allocation4 + $0x8] sm:$0xff]
          %v1553 = vld [vmem:[#allocation4 + $0x10] sm:$0xff]
          %v1554 = vld [vmem:[#allocation4 + $0x18] sm:$0xff]
          %v1555 = vrcp.pop %v1551
          %v1556 = vrcp.pop %v1552
          %v1557 = vrcp.pop %v1553
          %v1558 = vrcp.pop %v1554
          %v1559 = vld [vmem:[#allocation5] sm:$0xff]
          %v1560 = vld [vmem:[#allocation5 + $0x10] sm:$0xff]
          %v1561 = vld [vmem:[#allocation5 + $0x20] sm:$0xff]
          %v1562 = vld [vmem:[#allocation5 + $0x30] sm:$0xff]
          %1564 = vset.pattern.permute.xlu0 0
          %1565 = vperm.xlu0 %1564, %v1555
          %v1566 = vpop.permute.xlu0 %1565
          %1569 = vset.pattern.permute.xlu0 0
          %1570 = vperm.xlu0 %1569, %v1556
          %v1571 = vpop.permute.xlu0 %1570
          %1574 = vset.pattern.permute.xlu0 0
          %1575 = vperm.xlu0 %1574, %v1557
          %v1576 = vpop.permute.xlu0 %1575
          %1579 = vset.pattern.permute.xlu0 0
          %1580 = vperm.xlu0 %1579, %v1558
          %v1581 = vpop.permute.xlu0 %1580
          %v1583 = vmul.f32 %v1559, %v1566
          %v1584 = vmul.f32 %v1560, %v1571
          %v1585 = vmul.f32 %v1561, %v1576
          %v1586 = vmul.f32 %v1562, %v1581
          %1587 = vst [vmem:[#allocation5] sm:$0xff] %v1583
          %1588 = vst [vmem:[#allocation5 + $0x10] sm:$0xff] %v1584
          %1589 = vst [vmem:[#allocation5 + $0x20] sm:$0xff] %v1585
          %1590 = vst [vmem:[#allocation5 + $0x30] sm:$0xff] %v1586
          %v1591 = vld [vmem:[#allocation4] sm:$0xff]
          %v1592 = vld [vmem:[#allocation4 + $0x8] sm:$0xff]
          %v1593 = vld [vmem:[#allocation4 + $0x10] sm:$0xff]
          %v1594 = vld [vmem:[#allocation4 + $0x18] sm:$0xff]
          %v1595 = vrcp.pop %v1591
          %v1596 = vrcp.pop %v1592
          %v1597 = vrcp.pop %v1593
          %v1598 = vrcp.pop %v1594
          %v1599 = vld [vmem:[#allocation5 + $0x8] sm:$0xff]
          %v1600 = vld [vmem:[#allocation5 + $0x18] sm:$0xff]
          %v1601 = vld [vmem:[#allocation5 + $0x28] sm:$0xff]
          %v1602 = vld [vmem:[#allocation5 + $0x38] sm:$0xff]
          %1604 = vset.pattern.permute.xlu0 1
          %1605 = vperm.xlu0 %1604, %v1595
          %v1606 = vpop.permute.xlu0 %1605
          %1609 = vset.pattern.permute.xlu0 1
          %1610 = vperm.xlu0 %1609, %v1596
          %v1611 = vpop.permute.xlu0 %1610
          %1614 = vset.pattern.permute.xlu0 1
          %1615 = vperm.xlu0 %1614, %v1597
          %v1616 = vpop.permute.xlu0 %1615
          %1619 = vset.pattern.permute.xlu0 1
          %1620 = vperm.xlu0 %1619, %v1598
          %v1621 = vpop.permute.xlu0 %1620
          %v1623 = vmul.f32 %v1599, %v1606
          %v1624 = vmul.f32 %v1600, %v1611
          %v1625 = vmul.f32 %v1601, %v1616
          %v1626 = vmul.f32 %v1602, %v1621
          %1627 = vst [vmem:[#allocation5 + $0x8] sm:$0xff] %v1623
          %1628 = vst [vmem:[#allocation5 + $0x18] sm:$0xff] %v1624
          %1629 = vst [vmem:[#allocation5 + $0x28] sm:$0xff] %v1625
          %1630 = vst [vmem:[#allocation5 + $0x38] sm:$0xff] %v1626
          %v1631 = vld [vmem:[#allocation5] sm:$0xff]
          %v1632 = vld [vmem:[#allocation5 + $0x8] sm:$0xff]
          %v1633 = vld [vmem:[#allocation5 + $0x10] sm:$0xff]
          %v1634 = vld [vmem:[#allocation5 + $0x18] sm:$0xff]
          %v1635 = vld [vmem:[#allocation5 + $0x20] sm:$0xff]
          %v1636 = vld [vmem:[#allocation5 + $0x28] sm:$0xff]
          %v1637 = vld [vmem:[#allocation5 + $0x30] sm:$0xff]
          %v1638 = vld [vmem:[#allocation5 + $0x38] sm:$0xff]
          %v1639 = vpack.c.bf16 %v1633, %v1631
          %v1640 = vpack.c.bf16 %v1634, %v1632
          %v1641 = vpack.c.bf16 %v1637, %v1635
          %v1642 = vpack.c.bf16 %v1638, %v1636
          %v1643 = vld [vmem:[#allocation14] sm:$0xf]
          %v1644 = vld [vmem:[#allocation14 + $0x4] sm:$0xf]
          %v1645 = vld [vmem:[#allocation14 + $0x8] sm:$0xf]
          %v1646 = vld [vmem:[#allocation14 + $0xc] sm:$0xf]
          %v1647 = vld [vmem:[#allocation14 + $0x10] sm:$0xf]
          %v1648 = vld [vmem:[#allocation14 + $0x14] sm:$0xf]
          %v1649 = vld [vmem:[#allocation14 + $0x18] sm:$0xf]
          %v1650 = vld [vmem:[#allocation14 + $0x1c] sm:$0xf]
          %v1651 = vld [vmem:[#allocation14 + $0x20] sm:$0xf]
          %v1652 = vld [vmem:[#allocation14 + $0x24] sm:$0xf]
          %v1653 = vld [vmem:[#allocation14 + $0x28] sm:$0xf]
          %v1654 = vld [vmem:[#allocation14 + $0x2c] sm:$0xf]
          %v1655 = vld [vmem:[#allocation14 + $0x30] sm:$0xf]
          %v1656 = vld [vmem:[#allocation14 + $0x34] sm:$0xf]
          %v1657 = vld [vmem:[#allocation14 + $0x38] sm:$0xf]
          %v1658 = vld [vmem:[#allocation14 + $0x3c] sm:$0xf]
          %v1659 = vld [vmem:[#allocation14 + $0x40] sm:$0xf]
          %v1660 = vld [vmem:[#allocation14 + $0x44] sm:$0xf]
          %v1661 = vld [vmem:[#allocation14 + $0x48] sm:$0xf]
          %v1662 = vld [vmem:[#allocation14 + $0x4c] sm:$0xf]
          %v1663 = vld [vmem:[#allocation14 + $0x50] sm:$0xf]
          %v1664 = vld [vmem:[#allocation14 + $0x54] sm:$0xf]
          %v1665 = vld [vmem:[#allocation14 + $0x58] sm:$0xf]
          %v1666 = vld [vmem:[#allocation14 + $0x5c] sm:$0xf]
          %v1667 = vld [vmem:[#allocation14 + $0x60] sm:$0xf]
          %v1668 = vld [vmem:[#allocation14 + $0x64] sm:$0xf]
          %v1669 = vld [vmem:[#allocation14 + $0x68] sm:$0xf]
          %v1670 = vld [vmem:[#allocation14 + $0x6c] sm:$0xf]
          %v1671 = vld [vmem:[#allocation14 + $0x70] sm:$0xf]
          %v1672 = vld [vmem:[#allocation14 + $0x74] sm:$0xf]
          %v1673 = vld [vmem:[#allocation14 + $0x78] sm:$0xf]
          %v1674 = vld [vmem:[#allocation14 + $0x7c] sm:$0xf]
          %v1675 = vld [vmem:[%s9] sm:$0x1]
          %v1677 = vlaneseq
          %v1678 = vshrl.u32 %v1677, 7
          %v1679 = vsub.s32 0, %v1678
          %v1680 = vrot.slane %v1675, %v1679
          %v1714 = vunpack.c.l.b16 %v1643
          %v1715 = vunpack.c.l.b16 %v1644
          %v1716 = vunpack.c.l.b16 %v1645
          %v1717 = vunpack.c.l.b16 %v1646
          %v1718 = vunpack.c.l.b16 %v1647
          %v1719 = vunpack.c.l.b16 %v1648
          %v1720 = vunpack.c.l.b16 %v1649
          %v1721 = vunpack.c.l.b16 %v1650
          %v1722 = vunpack.c.l.b16 %v1651
          %v1723 = vunpack.c.l.b16 %v1652
          %v1724 = vunpack.c.l.b16 %v1653
          %v1725 = vunpack.c.l.b16 %v1654
          %v1726 = vunpack.c.l.b16 %v1655
          %v1727 = vunpack.c.l.b16 %v1656
          %v1728 = vunpack.c.l.b16 %v1657
          %v1729 = vunpack.c.l.b16 %v1658
          %v1730 = vunpack.c.l.b16 %v1659
          %v1731 = vunpack.c.l.b16 %v1660
          %v1732 = vunpack.c.l.b16 %v1661
          %v1733 = vunpack.c.l.b16 %v1662
          %v1734 = vunpack.c.l.b16 %v1663
          %v1735 = vunpack.c.l.b16 %v1664
          %v1736 = vunpack.c.l.b16 %v1665
          %v1737 = vunpack.c.l.b16 %v1666
          %v1738 = vunpack.c.l.b16 %v1667
          %v1739 = vunpack.c.l.b16 %v1668
          %v1740 = vunpack.c.l.b16 %v1669
          %v1741 = vunpack.c.l.b16 %v1670
          %v1742 = vunpack.c.l.b16 %v1671
          %v1743 = vunpack.c.l.b16 %v1672
          %v1744 = vunpack.c.l.b16 %v1673
          %v1745 = vunpack.c.l.b16 %v1674
          %v1746 = vpack.c.b16 %v1715, %v1714
          %v1747 = vpack.c.b16 %v1717, %v1716
          %v1748 = vpack.c.b16 %v1719, %v1718
          %v1749 = vpack.c.b16 %v1721, %v1720
          %v1750 = vpack.c.b16 %v1723, %v1722
          %v1751 = vpack.c.b16 %v1725, %v1724
          %v1752 = vpack.c.b16 %v1727, %v1726
          %v1753 = vpack.c.b16 %v1729, %v1728
          %v1754 = vpack.c.b16 %v1731, %v1730
          %v1755 = vpack.c.b16 %v1733, %v1732
          %v1756 = vpack.c.b16 %v1735, %v1734
          %v1757 = vpack.c.b16 %v1737, %v1736
          %v1758 = vpack.c.b16 %v1739, %v1738
          %v1759 = vpack.c.b16 %v1741, %v1740
          %v1760 = vpack.c.b16 %v1743, %v1742
          %v1761 = vpack.c.b16 %v1745, %v1744
          %1778 = vmatprep.subr.bf16.mxu0 0
          %1779 = vmatpush1.bf16.msra.mxu0 %v1746
          %1780 = vmatprep.subr.bf16.mxu0 0
          %1781 = vmatpush1.bf16.msra.mxu0 %v1747
          %1782 = vmatprep.subr.bf16.mxu0 0
          %1783 = vmatpush1.bf16.msra.mxu0 %v1748
          %1784 = vmatprep.subr.bf16.mxu0 0
          %1785 = vmatpush1.bf16.msra.mxu0 %v1749
          %1786 = vmatprep.subr.bf16.mxu0 0
          %1787 = vmatpush1.bf16.msra.mxu0 %v1750
          %1788 = vmatprep.subr.bf16.mxu0 0
          %1789 = vmatpush1.bf16.msra.mxu0 %v1751
          %1790 = vmatprep.subr.bf16.mxu0 0
          %1791 = vmatpush1.bf16.msra.mxu0 %v1752
          %1792 = vmatprep.subr.bf16.mxu0 0
          %1793 = vmatpush1.bf16.msra.mxu0 %v1753
          %1794 = vmatprep.subr.bf16.mxu0 0
          %1795 = vmatpush1.bf16.msra.mxu0 %v1754
          %1796 = vmatprep.subr.bf16.mxu0 0
          %1797 = vmatpush1.bf16.msra.mxu0 %v1755
          %1798 = vmatprep.subr.bf16.mxu0 0
          %1799 = vmatpush1.bf16.msra.mxu0 %v1756
          %1800 = vmatprep.subr.bf16.mxu0 0
          %1801 = vmatpush1.bf16.msra.mxu0 %v1757
          %1802 = vmatprep.subr.bf16.mxu0 0
          %1803 = vmatpush1.bf16.msra.mxu0 %v1758
          %1804 = vmatprep.subr.bf16.mxu0 0
          %1805 = vmatpush1.bf16.msra.mxu0 %v1759
          %1806 = vmatprep.subr.bf16.mxu0 0
          %1807 = vmatpush1.bf16.msra.mxu0 %v1760
          %1808 = vmatprep.subr.bf16.mxu0 0
          %1809 = vmatpush1.bf16.msra.mxu0 %v1761
          %1810 = vmatprep.mubr.bf16.mxu0 %v1640
          %1811 = vmatmul.mubr.bf16.gmra.mrb[0].mxu0 %v1639
          %v1812 = vpop.f32.mrb[0].mxu0
          %v1813 = vadd.f32 %v1680, %v1812
          %v1814 = vpop.f32.mrb[0].mxu0
          %v1815 = vpop.f32.mrb[0].mxu0
          %v1816 = vadd.f32 %v1680, %v1815
          %v1817 = vpop.f32.mrb[0].mxu0
          %1818 = vmatprep.mubr.bf16.mxu0 %v1642
          %1819 = vmatmul.mubr.bf16.gmra.mrb[0].mxu0 %v1641
          %v1820 = vpop.f32.mrb[0].mxu0
          %v1821 = vadd.f32 %v1680, %v1820
          %v1822 = vpop.f32.mrb[0].mxu0
          %v1823 = vpop.f32.mrb[0].mxu0
          %v1824 = vadd.f32 %v1680, %v1823
          %v1825 = vpop.f32.mrb[0].mxu0
          %1826 = vdwg.mxu0
          %v1827 = vld [vmem:[%s414] sm:$0xff]
          %v1828 = vld [vmem:[%s414 + $0x8] sm:$0xff]
          %v1829 = vld [vmem:[%s414 + $0x10] sm:$0xff]
          %v1830 = vld [vmem:[%s414 + $0x18] sm:$0xff]
          %v1831 = vadd.f32 %v1813, %v1827
          %v1832 = vadd.f32 %v1816, %v1828
          %v1833 = vadd.f32 %v1821, %v1829
          %v1834 = vadd.f32 %v1824, %v1830
          %1835 = vst [vmem:[%s476] sm:$0xff] %v1831
          %1836 = vst [vmem:[%s476 + $0x8] sm:$0xff] %v1832
          %1837 = vst [vmem:[%s476 + $0x10] sm:$0xff] %v1833
          %1838 = vst [vmem:[%s476 + $0x18] sm:$0xff] %v1834
        $region88: #{tpu_custom_call.1} parent=59 // pred_fallthru
          _
        %s1839 = sand.u32 %s273, 1
        %s1840 = scalar_lea.sflag [#allocation8], %s1839
        %s1841 = sand.u32 %s273, 1
        %s1842 = smul.addr %s1841, 32
        %s1843 = scalar_lea.vmem [#allocation15], %s1842
        // Predicated region
        $region89: #{tpu_custom_call.1} parent=59 // pred_check
          %p1844 = pneg %p283
        $region90: #{tpu_custom_call.1} parent=59 // pred_check_branch
          %1846 = sbr.rel (%p1844) target = $region92
        $region91: #{tpu_custom_call.1} parent=59 // pred_region
          %s1848 = ssub.s32 512, 512
          %1849 = vsyncadd %s1840, %s1848
          %s1850 = smul.addr %s35, 4
          %s1851 = smul.addr %s1850, 128
          %s1852 = scalar_lea.hbm %s10, %s1851
          %s1853 = sshll.u32 %s1843, 4
          %s1854 = int_to_ptr.vmem [resolvable:$true] %s1853
          %1859 = dma.vmem_to_hbm [thread:$0]  %s1854, 512, %s1852, %s1840, 128, 128, 8
        $region92: #{tpu_custom_call.1} parent=59 // pred_fallthru
          _
      $region60: #{tpu_custom_call.1} parent=5 // pred_fallthru
        _
      %p1860 = scmp.le.s32.totalorder 2, %s26
      // Predicated region
      $region93: #{tpu_custom_call.1} parent=5 // pred_check
        %p1861 = pneg %p1860
      $region94: #{tpu_custom_call.1} parent=5 // pred_check_branch
        %1863 = sbr.rel (%p1861) target = $region96
      $region95: #{tpu_custom_call.1} parent=5 // pred_region
        %s1864 = ssub.s32 %s26, 2
        // Predicated region
        $region97: #{tpu_custom_call.1} parent=95 // pred_check
          %p1865 = pneg %p289
        $region98: #{tpu_custom_call.1} parent=95 // pred_check_branch
          %1867 = sbr.rel (%p1865) target = $region100
        $region99: #{tpu_custom_call.1} parent=95 // pred_region
          %s1868 = sand.u32 %s274, 1
          %s1869 = scalar_lea.sflag [#allocation8], %s1868
          %s1870 = sand.u32 %s274, 1
          %s1871 = smul.addr %s1870, 32
          %s1872 = scalar_lea.vmem [#allocation15], %s1871
          %1873 = dma.done %s1869, 512
        $region100: #{tpu_custom_call.1} parent=95 // pred_fallthru
          _
      $region96: #{tpu_custom_call.1} parent=5 // pred_fallthru
        _
    $region6: #{tpu_custom_call.1} parent=1 // loop_footer
      %s30 = sadd.s32 1, %s26
    $region7: #{tpu_custom_call.1} parent=1 // loop_footer_branch
      %25 = sbr.rel target = $region3
    $region8: #{tpu_custom_call.1} parent=1 // loop_exit
      _
    %1874 = vsyncpa [#allocation7], 1
    %s1875 = scalar_lea.sflag [#allocation7], 1
    %1876 = vsyncpa %s1875, 1
    %1877 = vsyncpa [#allocation10], 1
    %s1878 = scalar_lea.sflag [#allocation10], 1
    %1879 = vsyncpa %s1878, 1
    %1880 = vsyncpa [#allocation13], 1
    %1881 = vsyncpa [#allocation8], 1
    %s1882 = scalar_lea.sflag [#allocation8], 1
    %1883 = vsyncpa %s1882, 1

</llo_original>
